<compile_context>
chip_gen: v6e
topology: v6e:2x2x1
jax: 0.10.0
libtpu: 0.0.40
codegen_flags: <defaults>
</compile_context>

<pallas_src>
import functools
import math

import jax
import jax.numpy as jnp
import numpy as np
from jax.experimental import pallas as pl
from jax.experimental.pallas import tpu as pltpu


def _layernorm(z, gamma, beta, eps):
    mu = jnp.mean(z, axis=-1, keepdims=True)
    var = jnp.mean((z - mu) ** 2, axis=-1, keepdims=True)
    return (z - mu) * jax.lax.rsqrt(var + eps) * gamma + beta


# --------------------------- pass 1: LN1 + QKV -------------------------------
def _qkv_proj_kernel(x_ref, ln1_g, ln1_b, wqkv, bqkv,
                     q_ref, k_ref, v_ref, *, hidden_dim, eps=1e-6):
    """One (batch, seq-tile) block: h = LN1(x); [q|k|v] = h @ Wqkv + bqkv."""
    D = hidden_dim
    h = _layernorm(x_ref[0].astype(jnp.float32), ln1_g[0], ln1_b[0], eps)
    qkv = jnp.dot(h.astype(jnp.bfloat16), wqkv[...],
                  preferred_element_type=jnp.float32) + bqkv[0]
    # Column slices at D-aligned offsets; stores to q/k/v are full-lane-width.
    q_ref[0] = qkv[:, :D].astype(jnp.bfloat16)          # Q is pre-scaled
    k_ref[0] = qkv[:, D:2 * D].astype(jnp.bfloat16)
    v_ref[0] = qkv[:, 2 * D:].astype(jnp.bfloat16)


# ------------------- pass 2: attention + out-proj + MLP ----------------------
def _attn_mlp_kernel(x_ref, q_ref, k_ref, v_ref,
                     wo_r, bo, ln2_g, ln2_b, w1, b1, w2, b2,
                     out_ref, *, eps=1e-6):
    # x_ref : (1, TS, D)  f32   residual rows of this tile
    # q_ref : (1, H, TS, hd) bf16   (pre-scaled by 1/sqrt(hd))
    # k_ref : (1, H, S,  hd) bf16
    # v_ref : (1, H, S,  hd) bf16
    # wo_r  : (H, hd, D) bf16   out-projection weight, head-major rows
    q = q_ref[0]                                              # (H, TS, hd)
    k = k_ref[0]                                              # (H, S,  hd)
    v = v_ref[0]

    # ---- all heads at once: batched QK^T, softmax, PV ----------------------
    # TODO(synk): for very long S, stream K/V blocks with online softmax
    # (flash-style) instead of materializing the (H, TS, S) score tile.
    s = jax.lax.dot_general(q, k, (((2,), (2,)), ((0,), (0,))),
                            preferred_element_type=jnp.float32)   # (H, TS, S)
    s = s - jnp.max(s, axis=-1, keepdims=True)
    p = jnp.exp(s)
    # EUP reciprocal: attention probs sum to 1 only to ~1e-3 rel (intended).
    p = p * pl.reciprocal(jnp.sum(p, axis=-1, keepdims=True), approx=True)
    o = jax.lax.dot_general(p.astype(jnp.bfloat16), v,
                            (((2,), (1,)), ((0,), (0,))),
                            preferred_element_type=jnp.float32)   # (H, TS, hd)

    # ---- out-projection without reassembling (TS, D): per-head matmul
    # batched over heads, then a cheap VPU reduction over the head axis.
    # TODO(synk): for very large H*TS*D a fori_loop accumulation would bound
    # the (H, TS, D) f32 live range.
    attn_h = jax.lax.dot_general(o.astype(jnp.bfloat16), wo_r[...],
                                 (((2,), (1,)), ((0,), (0,))),
                                 preferred_element_type=jnp.float32)  # (H,TS,D)
    attn = jnp.sum(attn_h, axis=0) + bo[0]                            # (TS, D)

    # ---- residual 1 (dropout = identity in eval) ----------------------------
    x_in = x_ref[0].astype(jnp.float32)
    x1 = attn + x_in

    # ---- LN2 + MLP: Linear -> GELU(exact erf) -> Linear ---------------------
    h2 = _layernorm(x1, ln2_g[0], ln2_b[0], eps)
    y = jnp.dot(h2.astype(jnp.bfloat16), w1[...],
                preferred_element_type=jnp.float32) + b1[0]
    # Exact-erf GELU in f32 matches torch.nn.GELU and stays v5e-friendly.
    # TODO(synk): on v6e/v7x a bf16 / tanh-approx GELU would move the epilogue
    # to the EUP and halve VALU work, at a small accuracy delta.
    y = jax.nn.gelu(y, approximate=False)
    y = jnp.dot(y.astype(jnp.bfloat16), w2[...],
                preferred_element_type=jnp.float32) + b2[0]

    out_ref[0] = (x1 + y).astype(out_ref.dtype)                    # residual 2


# ------------------------------ wrapper --------------------------------------
def _tpu_vmem_capacity_bytes():
    try:
        cap = getattr(pltpu.get_tpu_info(), "vmem_capacity_bytes", None)
        if cap:
            return int(cap)
    except Exception:
        pass
    return 128 * 1024 * 1024


def _pick_seq_tile(seq_len, max_tile):
    for ts in (512, 256, 128, 64, 32, 16, 8):
        if ts <= max_tile and seq_len % ts == 0:
            return ts
    return seq_len  # odd sizes: single full-extent tile (still legal)


def _const_spec(shape, single_buffer):
    """Grid-invariant input: constant index map, optionally single-buffered."""
    ndim = len(shape)
    index_map = lambda b, t: (0,) * ndim
    if single_buffer:
        return pl.BlockSpec(shape, index_map, pipeline_mode=pl.Buffered(1))
    return pl.BlockSpec(shape, index_map)


def _encoder_block_impl(x, params, *, num_heads, seq_tile, single_buffer_consts):
    B, S, D = x.shape
    assert D % num_heads == 0, "hidden_dim must be divisible by num_heads"
    hd = D // num_heads
    M = params["w1"].shape[1]
    scale = 1.0 / math.sqrt(hd)

    # Generation-aware VMEM budget / tile cap (v7x: 64 MiB physical VMEM).
    vmem_cap = _tpu_vmem_capacity_bytes()
    vmem_limit = min(96 * 1024 * 1024, (vmem_cap * 3) // 4)
    max_tile = 256 if vmem_cap <= 64 * 1024 * 1024 else 512
    if seq_tile is None:
        seq_tile = _pick_seq_tile(S, max_tile)
    assert S % seq_tile == 0
    num_tiles = S // seq_tile

    bf16, f32 = jnp.bfloat16, jnp.float32

    # Fold the attention 1/sqrt(head_dim) scale into the Q third of Wqkv/bqkv.
    col_scale = jnp.concatenate(
        [jnp.full((D,), scale, f32), jnp.ones((2 * D,), f32)])
    wqkv = (params["wqkv"] * col_scale).astype(bf16)                  # (D, 3D)
    bqkv = (params["bqkv"].reshape(-1) * col_scale).reshape(1, 3 * D).astype(f32)
    ln1_g = params["ln1_g"].reshape(1, D).astype(f32)
    ln1_b = params["ln1_b"].reshape(1, D).astype(f32)

    wo_r = params["wo"].reshape(num_heads, hd, D).astype(bf16)        # (H,hd,D)
    bo = params["bo"].reshape(1, D).astype(f32)
    ln2_g = params["ln2_g"].reshape(1, D).astype(f32)
    ln2_b = params["ln2_b"].reshape(1, D).astype(f32)
    w1 = params["w1"].astype(bf16)
    b1 = params["b1"].reshape(1, M).astype(f32)
    w2 = params["w2"].astype(bf16)
    b2 = params["b2"].reshape(1, D).astype(f32)

    cs = lambda shape: _const_spec(shape, single_buffer_consts)
    cparams = pltpu.CompilerParams(
        dimension_semantics=("parallel", "parallel"),
        vmem_limit_bytes=vmem_limit)

    # ---- pass 1: LN1 + fused QKV projection (bf16 outputs) ------------------
    qkv_out = jax.ShapeDtypeStruct((B, S, D), bf16)
    q, k, v = pl.pallas_call(
        functools.partial(_qkv_proj_kernel, hidden_dim=D),
        out_shape=(qkv_out, qkv_out, qkv_out),
        grid_spec=pltpu.PrefetchScalarGridSpec(
            num_scalar_prefetch=0,
            grid=(B, num_tiles),
            in_specs=[
                pl.BlockSpec((1, seq_tile, D), lambda b, t: (b, t, 0)),  # x
                cs((1, D)), cs((1, D)),              # ln1 gamma / beta
                cs((D, 3 * D)), cs((1, 3 * D)),      # Wqkv (Q pre-scaled), bqkv
            ],
            out_specs=(
                pl.BlockSpec((1, seq_tile, D), lambda b, t: (b, t, 0)),
                pl.BlockSpec((1, seq_tile, D), lambda b, t: (b, t, 0)),
                pl.BlockSpec((1, seq_tile, D), lambda b, t: (b, t, 0)),
            ),
        ),
        compiler_params=cparams,
    )(x, ln1_g, ln1_b, wqkv, bqkv)

    # Head-major rearrangement (B, S, D) -> (B, H, S, hd) done by XLA in HBM:
    # cheap bandwidth-only op that keeps lane-splitting reshapes out of the
    # kernels and lets attention run as clean head-batched MXU contractions.
    to_heads = lambda a: a.reshape(B, S, num_heads, hd).transpose(0, 2, 1, 3)
    qh, kh, vh = to_heads(q), to_heads(k), to_heads(v)

    # ---- pass 2: batched-head attention + out-proj + MLP --------------------
    return pl.pallas_call(
        _attn_mlp_kernel,
        out_shape=jax.ShapeDtypeStruct((B, S, D), x.dtype),
        grid_spec=pltpu.PrefetchScalarGridSpec(
            num_scalar_prefetch=0,
            grid=(B, num_tiles),
            in_specs=[
                pl.BlockSpec((1, seq_tile, D), lambda b, t: (b, t, 0)),   # x
                pl.BlockSpec((1, num_heads, seq_tile, hd),
                             lambda b, t: (b, 0, t, 0)),                   # Q
                pl.BlockSpec((1, num_heads, S, hd),
                             lambda b, t: (b, 0, 0, 0)),                   # K
                pl.BlockSpec((1, num_heads, S, hd),
                             lambda b, t: (b, 0, 0, 0)),                   # V
                cs((num_heads, hd, D)), cs((1, D)),   # Wo (head-major), bo
                cs((1, D)), cs((1, D)),               # ln2 gamma / beta
                cs((D, M)), cs((1, M)),               # W1, b1
                cs((M, D)), cs((1, D)),               # W2, b2
            ],
            out_specs=pl.BlockSpec((1, seq_tile, D), lambda b, t: (b, t, 0)),
        ),
        compiler_params=cparams,
    )(x, qh, kh, vh, wo_r, bo, ln2_g, ln2_b, w1, b1, w2, b2)


def encoder_block(x, params, *, num_heads, seq_tile=None):
    """x: (B, S, D) float32. params: 'natural' f32 weights from init_params."""
    try:
        return _encoder_block_impl(x, params, num_heads=num_heads,
                                   seq_tile=seq_tile, single_buffer_consts=True)
    except Exception:
        # Fallback if pl.Buffered(1) single-buffering of grid-invariant weights
        # is unsupported on this JAX/libtpu build: default double-buffered
        # constants (only costs extra VMEM; semantics identical).
        return _encoder_block_impl(x, params, num_heads=num_heads,
                                   seq_tile=seq_tile, single_buffer_consts=False)


# ------------------------------ test harness ---------------------------------
def init_params(key, hidden_dim, mlp_dim):
    """Deterministic synthetic parameters (f32, pre-transposed for x @ W)."""
    D, M = hidden_dim, mlp_dim
    ks = jax.random.split(key, 12)
    n = lambda k, shape, s: s * jax.random.normal(k, shape, jnp.float32)
    std = 0.02
    return {
        "ln1_g": 1.0 + n(ks[0], (1, D), 0.05),
        "ln1_b": n(ks[1], (1, D), 0.05),
        # nn.MultiheadAttention in_proj_weight is (3D, D) applied as x @ W^T;
        # stored here already transposed to (D, 3D).
        "wqkv": n(ks[2], (D, 3 * D), std),
        "bqkv": n(ks[3], (1, 3 * D), std),
        "wo":   n(ks[4], (D, D), std),
        "bo":   n(ks[5], (1, D), std),
        "ln2_g": 1.0 + n(ks[6], (1, D), 0.05),
        "ln2_b": n(ks[7], (1, D), 0.05),
        "w1":   n(ks[8], (D, M), std),
        "b1":   n(ks[9], (1, M), std),
        "w2":   n(ks[10], (M, D), std),
        "b2":   n(ks[11], (1, D), std),
    }


def encoder_block_reference(x, p, *, num_heads):
    """Pure-JAX f32 reference mirroring the PyTorch forward (eval mode)."""
    B, S, D = x.shape
    hd = D // num_heads
    eps = 1e-6

    def ln(z, g, b):
        mu = jnp.mean(z, axis=-1, keepdims=True)
        var = jnp.mean((z - mu) ** 2, axis=-1, keepdims=True)
        return (z - mu) / jnp.sqrt(var + eps) * g.reshape(-1) + b.reshape(-1)

    h = ln(x, p["ln1_g"], p["ln1_b"])
    qkv = h @ p["wqkv"] + p["bqkv"].reshape(-1)
    q, k, v = jnp.split(qkv, 3, axis=-1)
    q = q.reshape(B, S, num_heads, hd).transpose(0, 2, 1, 3)
    k = k.reshape(B, S, num_heads, hd).transpose(0, 2, 1, 3)
    v = v.reshape(B, S, num_heads, hd).transpose(0, 2, 1, 3)
    s = jnp.einsum("bhqd,bhkd->bhqk", q, k) / math.sqrt(hd)
    a = jax.nn.softmax(s, axis=-1)
    o = jnp.einsum("bhqk,bhkd->bhqd", a, v).transpose(0, 2, 1, 3).reshape(B, S, D)
    o = o @ p["wo"] + p["bo"].reshape(-1)
    x1 = o + x
    y = ln(x1, p["ln2_g"], p["ln2_b"])
    y = jax.nn.gelu(y @ p["w1"] + p["b1"].reshape(-1), approximate=False)
    y = y @ p["w2"] + p["b2"].reshape(-1)
    return x1 + y


if __name__ == "__main__":
    # Small shapes consistent with (batch, seq, hidden); head_dim=64 like ViT.
    B, S, D, H, M = 2, 16, 256, 4, 512

    key = jax.random.PRNGKey(0)
    kx, kp = jax.random.split(key)
    x = jax.random.normal(kx, (B, S, D), jnp.float32)
    params = init_params(kp, D, M)

    out = encoder_block(x, params, num_heads=H)
    out = jax.block_until_ready(out)

    ref = encoder_block_reference(x, params, num_heads=H)
    # bf16 matmul operands (f32 accumulation) + approx softmax reciprocal =>
    # loosened tolerance vs the f32 reference.
    np.testing.assert_allclose(np.asarray(out), np.asarray(ref),
                               rtol=2e-2, atol=2e-2)

    # TODO(synk): dropout / attention_dropout are identity here (eval-mode
    # semantics); training-mode RNG dropout masks are not implemented.
    print("KERNEL_OK")
</pallas_src>

<mosaic_0001>
module attributes {stable_mosaic.version = 11 : i64} {
  func.func @_qkv_proj_kernel(%arg0: i32, %arg1: i32, %arg2: memref<1x16x256xf32, #tpu.memory_space<vmem>>, %arg3: memref<1x256xf32, #tpu.memory_space<vmem>>, %arg4: memref<1x256xf32, #tpu.memory_space<vmem>>, %arg5: memref<256x768xbf16, #tpu.memory_space<vmem>>, %arg6: memref<1x768xf32, #tpu.memory_space<vmem>>, %arg7: memref<1x16x256xbf16, #tpu.memory_space<vmem>>, %arg8: memref<1x16x256xbf16, #tpu.memory_space<vmem>>, %arg9: memref<1x16x256xbf16, #tpu.memory_space<vmem>>) attributes {dimension_semantics = [#tpu.dimension_semantics<parallel>, #tpu.dimension_semantics<parallel>], iteration_bounds = array<i64: 2, 1>, scalar_prefetch = 0 : i64, scratch_operands = 0 : i64, tpu.core_type = #tpu.core_type<tc>, window_params = [{transform_indices = @transform_0, window_bounds = array<i64: 1, 16, 256>}, {pipeline_mode = #tpu.pipeline_mode<synchronous>, transform_indices = @transform_1, window_bounds = array<i64: 1, 256>}, {pipeline_mode = #tpu.pipeline_mode<synchronous>, transform_indices = @transform_2, window_bounds = array<i64: 1, 256>}, {pipeline_mode = #tpu.pipeline_mode<synchronous>, transform_indices = @transform_3, window_bounds = array<i64: 256, 768>}, {pipeline_mode = #tpu.pipeline_mode<synchronous>, transform_indices = @transform_4, window_bounds = array<i64: 1, 768>}, {transform_indices = @transform_5, window_bounds = array<i64: 1, 16, 256>}, {transform_indices = @transform_6, window_bounds = array<i64: 1, 16, 256>}, {transform_indices = @transform_7, window_bounds = array<i64: 1, 16, 256>}]} {
    %c0 = arith.constant 0 : index
    %c0_0 = arith.constant 0 : index
    %c0_1 = arith.constant 0 : index
    %0 = vector.load %arg2[%c0, %c0_0, %c0_1] : memref<1x16x256xf32, #tpu.memory_space<vmem>>, vector<1x16x256xf32>
    %1 = vector.shape_cast %0 : vector<1x16x256xf32> to vector<16x256xf32>
    %c0_2 = arith.constant 0 : index
    %c0_3 = arith.constant 0 : index
    %2 = vector.load %arg3[%c0_2, %c0_3] : memref<1x256xf32, #tpu.memory_space<vmem>>, vector<1x256xf32>
    %3 = vector.shape_cast %2 : vector<1x256xf32> to vector<256xf32>
    %c0_4 = arith.constant 0 : index
    %c0_5 = arith.constant 0 : index
    %4 = vector.load %arg4[%c0_4, %c0_5] : memref<1x256xf32, #tpu.memory_space<vmem>>, vector<1x256xf32>
    %5 = vector.shape_cast %4 : vector<1x256xf32> to vector<256xf32>
    %cst = arith.constant dense<0.000000e+00> : vector<16xf32>
    %6 = vector.multi_reduction <add>, %1, %cst [1] : vector<16x256xf32> to vector<16xf32>
    %7 = vector.shape_cast %6 : vector<16xf32> to vector<16x1xf32>
    %cst_6 = arith.constant 2.560000e+02 : f32
    %8 = vector.broadcast %cst_6 : f32 to vector<16x1xf32>
    %9 = arith.divf %7, %8 : vector<16x1xf32>
    %10 = vector.broadcast %9 : vector<16x1xf32> to vector<16x256xf32>
    %11 = arith.subf %1, %10 : vector<16x256xf32>
    %12 = arith.mulf %11, %11 : vector<16x256xf32>
    %cst_7 = arith.constant dense<0.000000e+00> : vector<16xf32>
    %13 = vector.multi_reduction <add>, %12, %cst_7 [1] : vector<16x256xf32> to vector<16xf32>
    %14 = vector.shape_cast %13 : vector<16xf32> to vector<16x1xf32>
    %cst_8 = arith.constant 2.560000e+02 : f32
    %15 = vector.broadcast %cst_8 : f32 to vector<16x1xf32>
    %16 = arith.divf %14, %15 : vector<16x1xf32>
    %17 = vector.broadcast %9 : vector<16x1xf32> to vector<16x256xf32>
    %18 = arith.subf %1, %17 : vector<16x256xf32>
    %cst_9 = arith.constant 9.99999997E-7 : f32
    %19 = vector.broadcast %cst_9 : f32 to vector<16x1xf32>
    %20 = arith.addf %16, %19 : vector<16x1xf32>
    %21 = math.rsqrt %20 : vector<16x1xf32>
    %22 = vector.broadcast %21 : vector<16x1xf32> to vector<16x256xf32>
    %23 = arith.mulf %18, %22 : vector<16x256xf32>
    %24 = vector.shape_cast %3 : vector<256xf32> to vector<1x256xf32>
    %25 = vector.broadcast %24 : vector<1x256xf32> to vector<16x256xf32>
    %26 = arith.mulf %23, %25 : vector<16x256xf32>
    %27 = vector.shape_cast %5 : vector<256xf32> to vector<1x256xf32>
    %28 = vector.broadcast %27 : vector<1x256xf32> to vector<16x256xf32>
    %29 = arith.addf %26, %28 : vector<16x256xf32>
    %30 = arith.truncf %29 : vector<16x256xf32> to vector<16x256xbf16>
    %c0_10 = arith.constant 0 : index
    %c0_11 = arith.constant 0 : index
    %31 = vector.load %arg5[%c0_10, %c0_11] : memref<256x768xbf16, #tpu.memory_space<vmem>>, vector<256x768xbf16>
    %cst_12 = arith.constant dense<0.000000e+00> : vector<16x768xf32>
    %32 = tpu.matmul %30, %31, %cst_12 {dimension_numbers = #tpu.dot_dimension_numbers<[1], [0], [0], [1], [0, 0, 1, 1], [], []>} : vector<16x256xbf16>, vector<256x768xbf16>, vector<16x768xf32> -> vector<16x768xf32>
    %c0_13 = arith.constant 0 : index
    %c0_14 = arith.constant 0 : index
    %33 = vector.load %arg6[%c0_13, %c0_14] : memref<1x768xf32, #tpu.memory_space<vmem>>, vector<1x768xf32>
    %34 = vector.shape_cast %33 : vector<1x768xf32> to vector<768xf32>
    %35 = vector.shape_cast %34 : vector<768xf32> to vector<1x768xf32>
    %36 = vector.broadcast %35 : vector<1x768xf32> to vector<16x768xf32>
    %37 = arith.addf %32, %36 : vector<16x768xf32>
    %38 = vector.extract_strided_slice %37 {offsets = [0, 0], sizes = [16, 256], strides = [1, 1]} : vector<16x768xf32> to vector<16x256xf32>
    %39 = arith.truncf %38 : vector<16x256xf32> to vector<16x256xbf16>
    %c0_15 = arith.constant 0 : index
    %c0_16 = arith.constant 0 : index
    %c0_17 = arith.constant 0 : index
    %40 = vector.load %arg7[%c0_15, %c0_16, %c0_17] : memref<1x16x256xbf16, #tpu.memory_space<vmem>>, vector<1x16x256xbf16>
    %41 = vector.shape_cast %40 : vector<1x16x256xbf16> to vector<16x256xbf16>
    %42 = vector.shape_cast %39 : vector<16x256xbf16> to vector<1x16x256xbf16>
    tpu.vector_store %arg7[%c0_15, %c0_16, %c0_17], %42 {strides = array<i32>} : memref<1x16x256xbf16, #tpu.memory_space<vmem>>, vector<1x16x256xbf16>,
    %43 = vector.extract_strided_slice %37 {offsets = [0, 256], sizes = [16, 256], strides = [1, 1]} : vector<16x768xf32> to vector<16x256xf32>
    %44 = arith.truncf %43 : vector<16x256xf32> to vector<16x256xbf16>
    %c0_18 = arith.constant 0 : index
    %c0_19 = arith.constant 0 : index
    %c0_20 = arith.constant 0 : index
    %45 = vector.load %arg8[%c0_18, %c0_19, %c0_20] : memref<1x16x256xbf16, #tpu.memory_space<vmem>>, vector<1x16x256xbf16>
    %46 = vector.shape_cast %45 : vector<1x16x256xbf16> to vector<16x256xbf16>
    %47 = vector.shape_cast %44 : vector<16x256xbf16> to vector<1x16x256xbf16>
    tpu.vector_store %arg8[%c0_18, %c0_19, %c0_20], %47 {strides = array<i32>} : memref<1x16x256xbf16, #tpu.memory_space<vmem>>, vector<1x16x256xbf16>,
    %48 = vector.extract_strided_slice %37 {offsets = [0, 512], sizes = [16, 256], strides = [1, 1]} : vector<16x768xf32> to vector<16x256xf32>
    %49 = arith.truncf %48 : vector<16x256xf32> to vector<16x256xbf16>
    %c0_21 = arith.constant 0 : index
    %c0_22 = arith.constant 0 : index
    %c0_23 = arith.constant 0 : index
    %50 = vector.load %arg9[%c0_21, %c0_22, %c0_23] : memref<1x16x256xbf16, #tpu.memory_space<vmem>>, vector<1x16x256xbf16>
    %51 = vector.shape_cast %50 : vector<1x16x256xbf16> to vector<16x256xbf16>
    %52 = vector.shape_cast %49 : vector<16x256xbf16> to vector<1x16x256xbf16>
    tpu.vector_store %arg9[%c0_21, %c0_22, %c0_23], %52 {strides = array<i32>} : memref<1x16x256xbf16, #tpu.memory_space<vmem>>, vector<1x16x256xbf16>,
    return
  }
  func.func @transform_0(%arg0: i32, %arg1: i32) -> (i32, i32, i32) {
    %c0_i32 = arith.constant 0 : i32
    %c0_i32_0 = arith.constant 0 : i32
    return %arg0, %arg1, %c0_i32 : i32, i32, i32
  }
  func.func @transform_1(%arg0: i32, %arg1: i32) -> (i32, i32) {
    %c0_i32 = arith.constant 0 : i32
    %c0_i32_0 = arith.constant 0 : i32
    %c0_i32_1 = arith.constant 0 : i32
    return %c0_i32, %c0_i32_0 : i32, i32
  }
  func.func @transform_2(%arg0: i32, %arg1: i32) -> (i32, i32) {
    %c0_i32 = arith.constant 0 : i32
    %c0_i32_0 = arith.constant 0 : i32
    %c0_i32_1 = arith.constant 0 : i32
    return %c0_i32, %c0_i32_0 : i32, i32
  }
  func.func @transform_3(%arg0: i32, %arg1: i32) -> (i32, i32) {
    %c0_i32 = arith.constant 0 : i32
    %c0_i32_0 = arith.constant 0 : i32
    %c0_i32_1 = arith.constant 0 : i32
    return %c0_i32, %c0_i32_0 : i32, i32
  }
  func.func @transform_4(%arg0: i32, %arg1: i32) -> (i32, i32) {
    %c0_i32 = arith.constant 0 : i32
    %c0_i32_0 = arith.constant 0 : i32
    %c0_i32_1 = arith.constant 0 : i32
    return %c0_i32, %c0_i32_0 : i32, i32
  }
  func.func @transform_5(%arg0: i32, %arg1: i32) -> (i32, i32, i32) {
    %c0_i32 = arith.constant 0 : i32
    %c0_i32_0 = arith.constant 0 : i32
    return %arg0, %arg1, %c0_i32 : i32, i32, i32
  }
  func.func @transform_6(%arg0: i32, %arg1: i32) -> (i32, i32, i32) {
    %c0_i32 = arith.constant 0 : i32
    %c0_i32_0 = arith.constant 0 : i32
    return %arg0, %arg1, %c0_i32 : i32, i32, i32
  }
  func.func @transform_7(%arg0: i32, %arg1: i32) -> (i32, i32, i32) {
    %c0_i32 = arith.constant 0 : i32
    %c0_i32_0 = arith.constant 0 : i32
    return %arg0, %arg1, %c0_i32 : i32, i32, i32
  }
}

module attributes {stable_mosaic.version = 11 : i64} {
  func.func @_qkv_proj_kernel(%arg0: i32, %arg1: i32, %arg2: memref<1x16x256xf32, #tpu.memory_space<vmem>>, %arg3: memref<1x256xf32, #tpu.memory_space<vmem>>, %arg4: memref<1x256xf32, #tpu.memory_space<vmem>>, %arg5: memref<256x768xbf16, #tpu.memory_space<vmem>>, %arg6: memref<1x768xf32, #tpu.memory_space<vmem>>, %arg7: memref<1x16x256xbf16, #tpu.memory_space<vmem>>, %arg8: memref<1x16x256xbf16, #tpu.memory_space<vmem>>, %arg9: memref<1x16x256xbf16, #tpu.memory_space<vmem>>) attributes {dimension_semantics = [#tpu.dimension_semantics<parallel>, #tpu.dimension_semantics<parallel>], iteration_bounds = array<i64: 2, 1>, scalar_prefetch = 0 : i64, scratch_operands = 0 : i64, tpu.core_type = #tpu.core_type<tc>, window_params = [{transform_indices = @transform_0, window_bounds = array<i64: 1, 16, 256>}, {pipeline_mode = #tpu.pipeline_mode<synchronous>, transform_indices = @transform_1, window_bounds = array<i64: 1, 256>}, {pipeline_mode = #tpu.pipeline_mode<synchronous>, transform_indices = @transform_2, window_bounds = array<i64: 1, 256>}, {pipeline_mode = #tpu.pipeline_mode<synchronous>, transform_indices = @transform_3, window_bounds = array<i64: 256, 768>}, {pipeline_mode = #tpu.pipeline_mode<synchronous>, transform_indices = @transform_4, window_bounds = array<i64: 1, 768>}, {transform_indices = @transform_5, window_bounds = array<i64: 1, 16, 256>}, {transform_indices = @transform_6, window_bounds = array<i64: 1, 16, 256>}, {transform_indices = @transform_7, window_bounds = array<i64: 1, 16, 256>}]} {
    %c0 = arith.constant 0 : index
    %c0_0 = arith.constant 0 : index
    %c0_1 = arith.constant 0 : index
    %0 = vector.load %arg2[%c0, %c0_0, %c0_1] : memref<1x16x256xf32, #tpu.memory_space<vmem>>, vector<1x16x256xf32>
    %1 = vector.shape_cast %0 : vector<1x16x256xf32> to vector<16x256xf32>
    %c0_2 = arith.constant 0 : index
    %c0_3 = arith.constant 0 : index
    %2 = vector.load %arg3[%c0_2, %c0_3] : memref<1x256xf32, #tpu.memory_space<vmem>>, vector<1x256xf32>
    %3 = vector.shape_cast %2 : vector<1x256xf32> to vector<256xf32>
    %c0_4 = arith.constant 0 : index
    %c0_5 = arith.constant 0 : index
    %4 = vector.load %arg4[%c0_4, %c0_5] : memref<1x256xf32, #tpu.memory_space<vmem>>, vector<1x256xf32>
    %5 = vector.shape_cast %4 : vector<1x256xf32> to vector<256xf32>
    %cst = arith.constant dense<0.000000e+00> : vector<16xf32>
    %6 = vector.multi_reduction <add>, %1, %cst [1] : vector<16x256xf32> to vector<16xf32>
    %7 = vector.shape_cast %6 : vector<16xf32> to vector<16x1xf32>
    %cst_6 = arith.constant 2.560000e+02 : f32
    %8 = vector.broadcast %cst_6 : f32 to vector<16x1xf32>
    %9 = arith.divf %7, %8 : vector<16x1xf32>
    %10 = vector.broadcast %9 : vector<16x1xf32> to vector<16x256xf32>
    %11 = arith.subf %1, %10 : vector<16x256xf32>
    %12 = arith.mulf %11, %11 : vector<16x256xf32>
    %cst_7 = arith.constant dense<0.000000e+00> : vector<16xf32>
    %13 = vector.multi_reduction <add>, %12, %cst_7 [1] : vector<16x256xf32> to vector<16xf32>
    %14 = vector.shape_cast %13 : vector<16xf32> to vector<16x1xf32>
    %cst_8 = arith.constant 2.560000e+02 : f32
    %15 = vector.broadcast %cst_8 : f32 to vector<16x1xf32>
    %16 = arith.divf %14, %15 : vector<16x1xf32>
    %17 = vector.broadcast %9 : vector<16x1xf32> to vector<16x256xf32>
    %18 = arith.subf %1, %17 : vector<16x256xf32>
    %cst_9 = arith.constant 9.99999997E-7 : f32
    %19 = vector.broadcast %cst_9 : f32 to vector<16x1xf32>
    %20 = arith.addf %16, %19 : vector<16x1xf32>
    %21 = math.rsqrt %20 : vector<16x1xf32>
    %22 = vector.broadcast %21 : vector<16x1xf32> to vector<16x256xf32>
    %23 = arith.mulf %18, %22 : vector<16x256xf32>
    %24 = vector.shape_cast %3 : vector<256xf32> to vector<1x256xf32>
    %25 = vector.broadcast %24 : vector<1x256xf32> to vector<16x256xf32>
    %26 = arith.mulf %23, %25 : vector<16x256xf32>
    %27 = vector.shape_cast %5 : vector<256xf32> to vector<1x256xf32>
    %28 = vector.broadcast %27 : vector<1x256xf32> to vector<16x256xf32>
    %29 = arith.addf %26, %28 : vector<16x256xf32>
    %30 = arith.truncf %29 : vector<16x256xf32> to vector<16x256xbf16>
    %c0_10 = arith.constant 0 : index
    %c0_11 = arith.constant 0 : index
    %31 = vector.load %arg5[%c0_10, %c0_11] : memref<256x768xbf16, #tpu.memory_space<vmem>>, vector<256x768xbf16>
    %cst_12 = arith.constant dense<0.000000e+00> : vector<16x768xf32>
    %32 = tpu.matmul %30, %31, %cst_12 {dimension_numbers = #tpu.dot_dimension_numbers<[1], [0], [0], [1], [0, 0, 1, 1], [], []>} : vector<16x256xbf16>, vector<256x768xbf16>, vector<16x768xf32> -> vector<16x768xf32>
    %c0_13 = arith.constant 0 : index
    %c0_14 = arith.constant 0 : index
    %33 = vector.load %arg6[%c0_13, %c0_14] : memref<1x768xf32, #tpu.memory_space<vmem>>, vector<1x768xf32>
    %34 = vector.shape_cast %33 : vector<1x768xf32> to vector<768xf32>
    %35 = vector.shape_cast %34 : vector<768xf32> to vector<1x768xf32>
    %36 = vector.broadcast %35 : vector<1x768xf32> to vector<16x768xf32>
    %37 = arith.addf %32, %36 : vector<16x768xf32>
    %38 = vector.extract_strided_slice %37 {offsets = [0, 0], sizes = [16, 256], strides = [1, 1]} : vector<16x768xf32> to vector<16x256xf32>
    %39 = arith.truncf %38 : vector<16x256xf32> to vector<16x256xbf16>
    %c0_15 = arith.constant 0 : index
    %c0_16 = arith.constant 0 : index
    %c0_17 = arith.constant 0 : index
    %40 = vector.load %arg7[%c0_15, %c0_16, %c0_17] : memref<1x16x256xbf16, #tpu.memory_space<vmem>>, vector<1x16x256xbf16>
    %41 = vector.shape_cast %40 : vector<1x16x256xbf16> to vector<16x256xbf16>
    %42 = vector.shape_cast %39 : vector<16x256xbf16> to vector<1x16x256xbf16>
    tpu.vector_store %arg7[%c0_15, %c0_16, %c0_17], %42 {strides = array<i32>} : memref<1x16x256xbf16, #tpu.memory_space<vmem>>, vector<1x16x256xbf16>,
    %43 = vector.extract_strided_slice %37 {offsets = [0, 256], sizes = [16, 256], strides = [1, 1]} : vector<16x768xf32> to vector<16x256xf32>
    %44 = arith.truncf %43 : vector<16x256xf32> to vector<16x256xbf16>
    %c0_18 = arith.constant 0 : index
    %c0_19 = arith.constant 0 : index
    %c0_20 = arith.constant 0 : index
    %45 = vector.load %arg8[%c0_18, %c0_19, %c0_20] : memref<1x16x256xbf16, #tpu.memory_space<vmem>>, vector<1x16x256xbf16>
    %46 = vector.shape_cast %45 : vector<1x16x256xbf16> to vector<16x256xbf16>
    %47 = vector.shape_cast %44 : vector<16x256xbf16> to vector<1x16x256xbf16>
    tpu.vector_store %arg8[%c0_18, %c0_19, %c0_20], %47 {strides = array<i32>} : memref<1x16x256xbf16, #tpu.memory_space<vmem>>, vector<1x16x256xbf16>,
    %48 = vector.extract_strided_slice %37 {offsets = [0, 512], sizes = [16, 256], strides = [1, 1]} : vector<16x768xf32> to vector<16x256xf32>
    %49 = arith.truncf %48 : vector<16x256xf32> to vector<16x256xbf16>
    %c0_21 = arith.constant 0 : index
    %c0_22 = arith.constant 0 : index
    %c0_23 = arith.constant 0 : index
    %50 = vector.load %arg9[%c0_21, %c0_22, %c0_23] : memref<1x16x256xbf16, #tpu.memory_space<vmem>>, vector<1x16x256xbf16>
    %51 = vector.shape_cast %50 : vector<1x16x256xbf16> to vector<16x256xbf16>
    %52 = vector.shape_cast %49 : vector<16x256xbf16> to vector<1x16x256xbf16>
    tpu.vector_store %arg9[%c0_21, %c0_22, %c0_23], %52 {strides = array<i32>} : memref<1x16x256xbf16, #tpu.memory_space<vmem>>, vector<1x16x256xbf16>,
    return
  }
  func.func @transform_0(%arg0: i32, %arg1: i32) -> (i32, i32, i32) {
    %c0_i32 = arith.constant 0 : i32
    %c0_i32_0 = arith.constant 0 : i32
    return %arg0, %arg1, %c0_i32 : i32, i32, i32
  }
  func.func @transform_1(%arg0: i32, %arg1: i32) -> (i32, i32) {
    %c0_i32 = arith.constant 0 : i32
    %c0_i32_0 = arith.constant 0 : i32
    %c0_i32_1 = arith.constant 0 : i32
    return %c0_i32, %c0_i32_0 : i32, i32
  }
  func.func @transform_2(%arg0: i32, %arg1: i32) -> (i32, i32) {
    %c0_i32 = arith.constant 0 : i32
    %c0_i32_0 = arith.constant 0 : i32
    %c0_i32_1 = arith.constant 0 : i32
    return %c0_i32, %c0_i32_0 : i32, i32
  }
  func.func @transform_3(%arg0: i32, %arg1: i32) -> (i32, i32) {
    %c0_i32 = arith.constant 0 : i32
    %c0_i32_0 = arith.constant 0 : i32
    %c0_i32_1 = arith.constant 0 : i32
    return %c0_i32, %c0_i32_0 : i32, i32
  }
  func.func @transform_4(%arg0: i32, %arg1: i32) -> (i32, i32) {
    %c0_i32 = arith.constant 0 : i32
    %c0_i32_0 = arith.constant 0 : i32
    %c0_i32_1 = arith.constant 0 : i32
    return %c0_i32, %c0_i32_0 : i32, i32
  }
  func.func @transform_5(%arg0: i32, %arg1: i32) -> (i32, i32, i32) {
    %c0_i32 = arith.constant 0 : i32
    %c0_i32_0 = arith.constant 0 : i32
    return %arg0, %arg1, %c0_i32 : i32, i32, i32
  }
  func.func @transform_6(%arg0: i32, %arg1: i32) -> (i32, i32, i32) {
    %c0_i32 = arith.constant 0 : i32
    %c0_i32_0 = arith.constant 0 : i32
    return %arg0, %arg1, %c0_i32 : i32, i32, i32
  }
  func.func @transform_7(%arg0: i32, %arg1: i32) -> (i32, i32, i32) {
    %c0_i32 = arith.constant 0 : i32
    %c0_i32_0 = arith.constant 0 : i32
    return %arg0, %arg1, %c0_i32 : i32, i32, i32
  }
}

</mosaic_0001>

<llo_original>
// kernel: tpu_custom_call.1
$region0: #{tpu_custom_call.1}
  #allocation0 [shape = 'u32[]', space=smem, size = 0x4, offset = 0x4, fixed_abs, tag = 'smem constant byte address 0x4 - core index']
  #allocation1 [shape = 'u32[144,128]{1,0:T(1,128)}', space=vmem, size = 0x12000, scoped, tag = 'internal scratch']
  %s0 = inlined_call_operand.hbm [shape: f32[2,16,256], index: 0, kind: input, shape index: {}]
  %s1 = inlined_call_operand.hbm [shape: f32[1,256], index: 1, kind: input, shape index: {}]
  %s2 = inlined_call_operand.hbm [shape: f32[1,256], index: 2, kind: input, shape index: {}]
  %s3 = inlined_call_operand.hbm [shape: bf16[256,768], index: 3, kind: input, shape index: {}]
  %s4 = inlined_call_operand.vmem [shape: f32[1,768], index: 4, kind: input, shape index: {}]
  %s5 = inlined_call_operand.hbm [shape: bf16[2,16,256], index: 5, kind: output, shape index: {0}]
  %s6 = inlined_call_operand.hbm [shape: bf16[2,16,256], index: 6, kind: output, shape index: {1}]
  %s7 = inlined_call_operand.hbm [shape: bf16[2,16,256], index: 7, kind: output, shape index: {2}]
  %8 = xla_tuple %s5, %s6, %s7
  %s9 = sld [smem:[#allocation0]]
  $region85: #{tpu_custom_call.1} parent=0
    _
  %s11 = ssub.s32 1, %s9
  %s12 = scalar_select 0, %s11, %s9
  $region1: #{tpu_custom_call.1} parent=0
    #allocation2 [shape = 'u8[32768]{0}', space=vmem, size = 0x8000, scoped, tag = 'input window, operand 0']
    #allocation3 [shape = 's32[2]{0}', space=sflag, size = 0x8, scoped, tag = 'scoped memory for tpu_custom_call.1']
    #allocation4 [shape = 's32[2]{0}', space=sflag, size = 0x8, scoped, tag = 'scoped memory for tpu_custom_call.1']
    #allocation5 [shape = 'u8[1024]{0}', space=vmem, size = 0x400, scoped, tag = 'input window, operand 1, single buffered']
    #allocation6 [shape = 's32[1]{0}', space=sflag, size = 0x4, scoped, tag = 'scoped memory for tpu_custom_call.1']
    #allocation7 [shape = 'u8[1024]{0}', space=vmem, size = 0x400, scoped, tag = 'input window, operand 2, single buffered']
    #allocation8 [shape = 'u8[393216]{0}', space=vmem, size = 0x60000, scoped, tag = 'input window, operand 3, single buffered']
    #allocation9 [shape = 's32[1]{0}', space=sflag, size = 0x4, scoped, tag = 'scoped memory for tpu_custom_call.1']
    #allocation10 [shape = 'u8[16384]{0}', space=vmem, size = 0x4000, scoped, tag = 'output window, operand 0']
    #allocation11 [shape = 'u8[16384]{0}', space=vmem, size = 0x4000, scoped, tag = 'output window, operand 1']
    #allocation12 [shape = 's32[2]{0}', space=sflag, size = 0x8, scoped, tag = 'scoped memory for tpu_custom_call.1']
    #allocation13 [shape = 'u8[16384]{0}', space=vmem, size = 0x4000, scoped, tag = 'output window, operand 2']
    %13 = vsyncpa [#allocation3], 0
    %s14 = scalar_lea.sflag [#allocation3], 1
    %15 = vsyncpa %s14, 0
    %16 = vsyncpa [#allocation6], 0
    %17 = vsyncpa [#allocation9], 0
    %18 = vsyncpa [#allocation4], 0
    %s19 = scalar_lea.sflag [#allocation4], 1
    %20 = vsyncpa %s19, 0
    %21 = vsyncpa [#allocation12], 0
    %s22 = scalar_lea.sflag [#allocation12], 1
    %23 = vsyncpa %s22, 0
    loop: start=0, step=1, limit=4
    $region2: #{tpu_custom_call.1} parent=1 // loop_pre_header
      _
    $region3: #{tpu_custom_call.1} parent=1 // loop_header
      %s25 = sphi 0, %s29
      %p26 = scmp.ge.s32.totalorder %s25, 4
      %s32 = sphi 0, %s44
      %s33 = sphi 0, %s40
      %s34 = sphi 0, %s32
      %s35 = sphi 0, %s33
      %s36 = sphi 0, %s34
      %s37 = sphi 0, %s35
      %s49 = sphi 0, %s51
      %s52 = sphi 0, %s49
      %s53 = sphi 0, %s52
      %s69 = sphi 0, %s53
      %s73 = sphi 0, %s73
      %s75 = sphi 0, %s73
      %s76 = sphi 0, %s75
      %s90 = sphi 0, %s76
      %s94 = sphi 0, %s94
      %s96 = sphi 0, %s94
      %s97 = sphi 0, %s96
      %s111 = sphi 0, %s97
      %s115 = sphi 0, %s115
      %s117 = sphi 0, %s115
      %s118 = sphi 0, %s117
      %s132 = sphi 0, %s118
      %s136 = sphi 0, %s136
      %s138 = sphi 0, %s136
      %s139 = sphi 0, %s138
      %s153 = sphi 0, %s139
      %s161 = sphi 0, %s163
      %s164 = sphi 0, %s161
      %s165 = sphi 0, %s164
      %s181 = sphi 0, %s165
      %s189 = sphi 0, %s191
      %s192 = sphi 0, %s189
      %s193 = sphi 0, %s192
      %s209 = sphi 0, %s193
      %s217 = sphi 0, %s219
      %s220 = sphi 0, %s217
      %s221 = sphi 0, %s220
      %s237 = sphi 0, %s221
    $region4: #{tpu_custom_call.1} parent=1 // loop_header_branch
      %28 = sbr.rel (%p26) target = $region8
    $region5: #{tpu_custom_call.1} parent=1 // loop_body
      %s30 = ssub.s32 %s25, 1
      %s31 = ssub.s32 %s25, 2
      %s38 = sadd.s32 1, %s33
      %p39 = scmp.ge.s32.totalorder %s38, 1
      %s40 = scalar_select %p39, 0, %s38
      %s41 = sadd.s32 1, %s32
      %s42 = scalar_select %p39, %s41, %s32
      %p43 = scmp.ge.s32.totalorder %s42, 2
      %s44 = scalar_select %p43, 0, %s42
      %s45 = ssub.s32 %s32, %s44
      %s46 = ssub.s32 %s33, %s40
      %s47 = sor.u32 %s45, %s46
      %p48 = scmp.eq.s32.totalorder %s47, 0
      %s50 = sadd.s32 %s49, 1
      %s51 = scalar_select %p48, %s49, %s50
      %p54 = pneg %p48
      %p55 = scmp.eq.s32.totalorder %s25, 1
      %p56 = por %p54, %p55
      %p57 = scmp.ne.s32.totalorder %s49, %s52
      %p58 = scmp.eq.s32.totalorder %s25, 0
      %p59 = por %p57, %p58
      %p60 = scmp.ne.s32.totalorder %s49, %s52
      %p61 = scmp.eq.s32.totalorder %s30, 1
      %p62 = por %p60, %p61
      %p63 = scmp.ne.s32.totalorder %s52, %s53
      %p64 = scmp.eq.s32.totalorder %s30, 0
      %p65 = por %p63, %p64
      %p66 = scmp.ne.s32.totalorder %s52, %s53
      %p67 = scmp.eq.s32.totalorder %s31, 1
      %p68 = por %p66, %p67
      %p70 = scmp.ne.s32.totalorder %s53, %s69
      %p71 = scmp.eq.s32.totalorder %s31, 0
      %p72 = por %p70, %p71
      %s74 = sadd.s32 %s73, 1
      %p77 = scmp.eq.s32.totalorder %s25, 1
      %p78 = scmp.ne.s32.totalorder %s73, %s75
      %p79 = scmp.eq.s32.totalorder %s25, 0
      %p80 = por %p78, %p79
      %p81 = scmp.ne.s32.totalorder %s73, %s75
      %p82 = scmp.eq.s32.totalorder %s30, 1
      %p83 = por %p81, %p82
      %p84 = scmp.ne.s32.totalorder %s75, %s76
      %p85 = scmp.eq.s32.totalorder %s30, 0
      %p86 = por %p84, %p85
      %p87 = scmp.ne.s32.totalorder %s75, %s76
      %p88 = scmp.eq.s32.totalorder %s31, 1
      %p89 = por %p87, %p88
      %p91 = scmp.ne.s32.totalorder %s76, %s90
      %p92 = scmp.eq.s32.totalorder %s31, 0
      %p93 = por %p91, %p92
      %s95 = sadd.s32 %s94, 1
      %p98 = scmp.eq.s32.totalorder %s25, 1
      %p99 = scmp.ne.s32.totalorder %s94, %s96
      %p100 = scmp.eq.s32.totalorder %s25, 0
      %p101 = por %p99, %p100
      %p102 = scmp.ne.s32.totalorder %s94, %s96
      %p103 = scmp.eq.s32.totalorder %s30, 1
      %p104 = por %p102, %p103
      %p105 = scmp.ne.s32.totalorder %s96, %s97
      %p106 = scmp.eq.s32.totalorder %s30, 0
      %p107 = por %p105, %p106
      %p108 = scmp.ne.s32.totalorder %s96, %s97
      %p109 = scmp.eq.s32.totalorder %s31, 1
      %p110 = por %p108, %p109
      %p112 = scmp.ne.s32.totalorder %s97, %s111
      %p113 = scmp.eq.s32.totalorder %s31, 0
      %p114 = por %p112, %p113
      %s116 = sadd.s32 %s115, 1
      %p119 = scmp.eq.s32.totalorder %s25, 1
      %p120 = scmp.ne.s32.totalorder %s115, %s117
      %p121 = scmp.eq.s32.totalorder %s25, 0
      %p122 = por %p120, %p121
      %p123 = scmp.ne.s32.totalorder %s115, %s117
      %p124 = scmp.eq.s32.totalorder %s30, 1
      %p125 = por %p123, %p124
      %p126 = scmp.ne.s32.totalorder %s117, %s118
      %p127 = scmp.eq.s32.totalorder %s30, 0
      %p128 = por %p126, %p127
      %p129 = scmp.ne.s32.totalorder %s117, %s118
      %p130 = scmp.eq.s32.totalorder %s31, 1
      %p131 = por %p129, %p130
      %p133 = scmp.ne.s32.totalorder %s118, %s132
      %p134 = scmp.eq.s32.totalorder %s31, 0
      %p135 = por %p133, %p134
      %s137 = sadd.s32 %s136, 1
      %p140 = scmp.eq.s32.totalorder %s25, 1
      %p141 = scmp.ne.s32.totalorder %s136, %s138
      %p142 = scmp.eq.s32.totalorder %s25, 0
      %p143 = por %p141, %p142
      %p144 = scmp.ne.s32.totalorder %s136, %s138
      %p145 = scmp.eq.s32.totalorder %s30, 1
      %p146 = por %p144, %p145
      %p147 = scmp.ne.s32.totalorder %s138, %s139
      %p148 = scmp.eq.s32.totalorder %s30, 0
      %p149 = por %p147, %p148
      %p150 = scmp.ne.s32.totalorder %s138, %s139
      %p151 = scmp.eq.s32.totalorder %s31, 1
      %p152 = por %p150, %p151
      %p154 = scmp.ne.s32.totalorder %s139, %s153
      %p155 = scmp.eq.s32.totalorder %s31, 0
      %p156 = por %p154, %p155
      %s157 = ssub.s32 %s32, %s44
      %s158 = ssub.s32 %s33, %s40
      %s159 = sor.u32 %s157, %s158
      %p160 = scmp.eq.s32.totalorder %s159, 0
      %s162 = sadd.s32 %s161, 1
      %s163 = scalar_select %p160, %s161, %s162
      %p166 = pneg %p160
      %p167 = scmp.eq.s32.totalorder %s25, 1
      %p168 = por %p166, %p167
      %p169 = scmp.ne.s32.totalorder %s161, %s164
      %p170 = scmp.eq.s32.totalorder %s25, 0
      %p171 = por %p169, %p170
      %p172 = scmp.ne.s32.totalorder %s161, %s164
      %p173 = scmp.eq.s32.totalorder %s30, 1
      %p174 = por %p172, %p173
      %p175 = scmp.ne.s32.totalorder %s164, %s165
      %p176 = scmp.eq.s32.totalorder %s30, 0
      %p177 = por %p175, %p176
      %p178 = scmp.ne.s32.totalorder %s164, %s165
      %p179 = scmp.eq.s32.totalorder %s31, 1
      %p180 = por %p178, %p179
      %p182 = scmp.ne.s32.totalorder %s165, %s181
      %p183 = scmp.eq.s32.totalorder %s31, 0
      %p184 = por %p182, %p183
      %s185 = ssub.s32 %s32, %s44
      %s186 = ssub.s32 %s33, %s40
      %s187 = sor.u32 %s185, %s186
      %p188 = scmp.eq.s32.totalorder %s187, 0
      %s190 = sadd.s32 %s189, 1
      %s191 = scalar_select %p188, %s189, %s190
      %p194 = pneg %p188
      %p195 = scmp.eq.s32.totalorder %s25, 1
      %p196 = por %p194, %p195
      %p197 = scmp.ne.s32.totalorder %s189, %s192
      %p198 = scmp.eq.s32.totalorder %s25, 0
      %p199 = por %p197, %p198
      %p200 = scmp.ne.s32.totalorder %s189, %s192
      %p201 = scmp.eq.s32.totalorder %s30, 1
      %p202 = por %p200, %p201
      %p203 = scmp.ne.s32.totalorder %s192, %s193
      %p204 = scmp.eq.s32.totalorder %s30, 0
      %p205 = por %p203, %p204
      %p206 = scmp.ne.s32.totalorder %s192, %s193
      %p207 = scmp.eq.s32.totalorder %s31, 1
      %p208 = por %p206, %p207
      %p210 = scmp.ne.s32.totalorder %s193, %s209
      %p211 = scmp.eq.s32.totalorder %s31, 0
      %p212 = por %p210, %p211
      %s213 = ssub.s32 %s32, %s44
      %s214 = ssub.s32 %s33, %s40
      %s215 = sor.u32 %s213, %s214
      %p216 = scmp.eq.s32.totalorder %s215, 0
      %s218 = sadd.s32 %s217, 1
      %s219 = scalar_select %p216, %s217, %s218
      %p222 = pneg %p216
      %p223 = scmp.eq.s32.totalorder %s25, 1
      %p224 = por %p222, %p223
      %p225 = scmp.ne.s32.totalorder %s217, %s220
      %p226 = scmp.eq.s32.totalorder %s25, 0
      %p227 = por %p225, %p226
      %p228 = scmp.ne.s32.totalorder %s217, %s220
      %p229 = scmp.eq.s32.totalorder %s30, 1
      %p230 = por %p228, %p229
      %p231 = scmp.ne.s32.totalorder %s220, %s221
      %p232 = scmp.eq.s32.totalorder %s30, 0
      %p233 = por %p231, %p232
      %p234 = scmp.ne.s32.totalorder %s220, %s221
      %p235 = scmp.eq.s32.totalorder %s31, 1
      %p236 = por %p234, %p235
      %p238 = scmp.ne.s32.totalorder %s221, %s237
      %p239 = scmp.eq.s32.totalorder %s31, 0
      %p240 = por %p238, %p239
      %p241 = scmp.le.s32.totalorder 1, %s25
      %p242 = scmp.lt.s32.totalorder %s25, 3
      %p243 = pnand %p241, %p242
      %p244 = pneg %p243
      // Predicated region
      $region9: #{tpu_custom_call.1} parent=5 // pred_check
        _
      $region10: #{tpu_custom_call.1} parent=5 // pred_check_branch
        %246 = sbr.rel (%p243) target = $region12
      $region11: #{tpu_custom_call.1} parent=5 // pred_region
        %s247 = ssub.s32 %s25, 1
        // Predicated region
        $region13: #{tpu_custom_call.1} parent=11 // pred_check
          %p248 = pneg %p86
        $region14: #{tpu_custom_call.1} parent=11 // pred_check_branch
          %250 = sbr.rel (%p248) target = $region16
        $region15: #{tpu_custom_call.1} parent=11 // pred_region
          %s252 = ssub.s32 32, 32
          %253 = vsyncadd [#allocation6], %s252
          %s255 = sshll.u32 [#allocation5], 4
          %s256 = int_to_ptr.vmem [resolvable:$true] %s255
          %258 = dma.hbm_to_vmem [thread:$0]  %s1, 32, %s256, [#allocation6]
        $region16: #{tpu_custom_call.1} parent=11 // pred_fallthru
          _
        // Predicated region
        $region17: #{tpu_custom_call.1} parent=11 // pred_check
          %p259 = pneg %p107
        $region18: #{tpu_custom_call.1} parent=11 // pred_check_branch
          %261 = sbr.rel (%p259) target = $region20
        $region19: #{tpu_custom_call.1} parent=11 // pred_region
          %s263 = ssub.s32 32, 32
          %264 = vsyncadd [#allocation6], %s263
          %s266 = sshll.u32 [#allocation7], 4
          %s267 = int_to_ptr.vmem [resolvable:$true] %s266
          %269 = dma.hbm_to_vmem [thread:$0]  %s2, 32, %s267, [#allocation6]
        $region20: #{tpu_custom_call.1} parent=11 // pred_fallthru
          _
        // Predicated region
        $region21: #{tpu_custom_call.1} parent=11 // pred_check
          %p270 = pneg %p128
        $region22: #{tpu_custom_call.1} parent=11 // pred_check_branch
          %272 = sbr.rel (%p270) target = $region24
        $region23: #{tpu_custom_call.1} parent=11 // pred_region
          %s274 = ssub.s32 12288, 12288
          %275 = vsyncadd [#allocation9], %s274
          %s276 = sshll.u32 [#allocation8], 4
          %s277 = int_to_ptr.vmem [resolvable:$true] %s276
          %282 = dma.hbm_to_vmem [thread:$0]  %s3, 12288, %s277, [#allocation9], 384, 384, 24
        $region24: #{tpu_custom_call.1} parent=11 // pred_fallthru
          _
        // Predicated region
        $region25: #{tpu_custom_call.1} parent=11 // pred_check
          %p283 = pneg %p149
        $region26: #{tpu_custom_call.1} parent=11 // pred_check_branch
          %285 = sbr.rel (%p283) target = $region28
        $region27: #{tpu_custom_call.1} parent=11 // pred_region
          _
        $region28: #{tpu_custom_call.1} parent=11 // pred_fallthru
          _
      $region12: #{tpu_custom_call.1} parent=5 // pred_fallthru
        _
      %p286 = scmp.lt.s32.totalorder %s25, 2
      // Predicated region
      $region29: #{tpu_custom_call.1} parent=5 // pred_check
        %p287 = pneg %p286
      $region30: #{tpu_custom_call.1} parent=5 // pred_check_branch
        %289 = sbr.rel (%p287) target = $region32
      $region31: #{tpu_custom_call.1} parent=5 // pred_region
        // Predicated region
        $region33: #{tpu_custom_call.1} parent=31 // pred_check
          %p290 = pneg %p59
        $region34: #{tpu_custom_call.1} parent=31 // pred_check_branch
          %292 = sbr.rel (%p290) target = $region36
        $region35: #{tpu_custom_call.1} parent=31 // pred_region
          %s293 = sand.u32 %s49, 1
          %s294 = scalar_lea.sflag [#allocation3], %s293
          %s295 = sand.u32 %s49, 1
          %s296 = smul.addr %s295, 32
          %s297 = scalar_lea.vmem [#allocation2], %s296
          %s298 = smul.u32 2, %s33
          %s300 = ssub.s32 512, 512
          %301 = vsyncadd %s294, %s300
          %s302 = smul.addr %s298, 2
          %s303 = smul.addr %s32, 4
          %s304 = sadd.s32 %s302, %s303
          %s305 = smul.addr %s304, 128
          %s306 = scalar_lea.hbm %s0, %s305
          %s307 = sshll.u32 %s297, 4
          %s308 = int_to_ptr.vmem [resolvable:$true] %s307
          %313 = dma.hbm_to_vmem [thread:$0]  %s306, 512, %s308, %s294, 256, 256, 16
        $region36: #{tpu_custom_call.1} parent=31 // pred_fallthru
          _
      $region32: #{tpu_custom_call.1} parent=5 // pred_fallthru
        _
      %p314 = scmp.le.s32.totalorder 1, %s25
      %p315 = scmp.lt.s32.totalorder %s25, 3
      %p316 = pnand %p314, %p315
      %p317 = pneg %p316
      // Predicated region
      $region37: #{tpu_custom_call.1} parent=5 // pred_check
        _
      $region38: #{tpu_custom_call.1} parent=5 // pred_check_branch
        %319 = sbr.rel (%p316) target = $region40
      $region39: #{tpu_custom_call.1} parent=5 // pred_region
        %s320 = ssub.s32 %s25, 1
        %s321 = sand.u32 %s52, 1
        %s322 = scalar_lea.sflag [#allocation3], %s321
        %s323 = sand.u32 %s52, 1
        %s324 = smul.addr %s323, 32
        %s325 = scalar_lea.vmem [#allocation2], %s324
        // Predicated region
        $region41: #{tpu_custom_call.1} parent=39 // pred_check
          %p326 = pneg %p65
        $region42: #{tpu_custom_call.1} parent=39 // pred_check_branch
          %328 = sbr.rel (%p326) target = $region44
        $region43: #{tpu_custom_call.1} parent=39 // pred_region
          %329 = dma.done %s322, 512
        $region44: #{tpu_custom_call.1} parent=39 // pred_fallthru
          _
        // Predicated region
        $region45: #{tpu_custom_call.1} parent=39 // pred_check
          %p330 = pneg %p86
        $region46: #{tpu_custom_call.1} parent=39 // pred_check_branch
          %332 = sbr.rel (%p330) target = $region48
        $region47: #{tpu_custom_call.1} parent=39 // pred_region
          %333 = dma.done [#allocation6], 32
        $region48: #{tpu_custom_call.1} parent=39 // pred_fallthru
          _
        // Predicated region
        $region49: #{tpu_custom_call.1} parent=39 // pred_check
          %p334 = pneg %p107
        $region50: #{tpu_custom_call.1} parent=39 // pred_check_branch
          %336 = sbr.rel (%p334) target = $region52
        $region51: #{tpu_custom_call.1} parent=39 // pred_region
          %337 = dma.done [#allocation6], 32
        $region52: #{tpu_custom_call.1} parent=39 // pred_fallthru
          _
        // Predicated region
        $region53: #{tpu_custom_call.1} parent=39 // pred_check
          %p338 = pneg %p128
        $region54: #{tpu_custom_call.1} parent=39 // pred_check_branch
          %340 = sbr.rel (%p338) target = $region56
        $region55: #{tpu_custom_call.1} parent=39 // pred_region
          %341 = dma.done [#allocation9], 12288
        $region56: #{tpu_custom_call.1} parent=39 // pred_fallthru
          _
        %s342 = sand.u32 %s52, 1
        %s343 = scalar_lea.sflag [#allocation3], %s342
        %s344 = sand.u32 %s52, 1
        %s345 = smul.addr %s344, 32
        %s346 = scalar_lea.vmem [#allocation2], %s345
        %p347 = pneg %p65
        %p348 = pneg %p62
        %p349 = pneg %p86
        %p350 = pneg %p83
        %p351 = pneg %p107
        %p352 = pneg %p104
        %p353 = pneg %p128
        %p354 = pneg %p125
        %p355 = pneg %p149
        %p356 = pneg %p146
        %p357 = pneg %p177
        %p358 = pneg %p174
        %s359 = sand.u32 %s164, 1
        %s360 = scalar_lea.sflag [#allocation4], %s359
        %s361 = sand.u32 %s164, 1
        %s362 = smul.addr %s361, 16
        %s363 = scalar_lea.vmem [#allocation10], %s362
        %p364 = pneg %p205
        %p365 = pneg %p202
        %s366 = sand.u32 %s30, 1
        %s367 = scalar_lea.sflag [#allocation12], %s366
        %s368 = sand.u32 %s192, 1
        %s369 = smul.addr %s368, 16
        %s370 = scalar_lea.vmem [#allocation11], %s369
        %p371 = pneg %p233
        %p372 = pneg %p230
        %s373 = sand.u32 %s30, 1
        %s374 = scalar_lea.sflag [#allocation12], %s373
        %s375 = sand.u32 %s220, 1
        %s376 = smul.addr %s375, 16
        %s377 = scalar_lea.vmem [#allocation13], %s376
        %s378 = smul.u32 2, %s35
        %s379 = smul.u32 2, %s35
        %s380 = smul.u32 2, %s35
        %s381 = smul.u32 2, %s35
        %v382 = vld [vmem:[%s325] sm:$0xff]
        %v383 = vld [vmem:[%s325 + $0x8] sm:$0xff]
        %v384 = vld [vmem:[%s325 + $0x10] sm:$0xff]
        %v385 = vld [vmem:[%s325 + $0x18] sm:$0xff]
        %v386 = vld [vmem:[#allocation5] sm:$0x3]
        %v387 = vld [vmem:[#allocation7] sm:$0x3]
        %v388 = vadd.f32 %v382, %v383
        %389 = vadd.xlane.f32.xlu0 %v388
        %v390 = vpop.xlane.xlu0 %389
        %v391 = vadd.f32 %v384, %v385
        %392 = vadd.xlane.f32.xlu0 %v391
        %v393 = vpop.xlane.xlu0 %392
        %v394 = vrcp.pop 256.0
        %v395 = vmul.f32 %v390, %v394
        %v396 = vmul.f32 %v393, %v394
        %v397 = vsub.f32 %v382, %v395
        %v398 = vsub.f32 %v383, %v395
        %v399 = vsub.f32 %v384, %v396
        %v400 = vsub.f32 %v385, %v396
        %v401 = vmul.f32 %v397, %v397
        %v402 = vmul.f32 %v398, %v398
        %v403 = vmul.f32 %v399, %v399
        %v404 = vmul.f32 %v400, %v400
        %v405 = vadd.f32 %v401, %v402
        %406 = vadd.xlane.f32.xlu0 %v405
        %v407 = vpop.xlane.xlu0 %406
        %v408 = vadd.f32 %v403, %v404
        %409 = vadd.xlane.f32.xlu0 %v408
        %v410 = vpop.xlane.xlu0 %409
        %v411 = vmul.f32 %v407, %v394
        %v412 = vmul.f32 %v410, %v394
        %v413 = vadd.f32 %v411, 1e-06
        %v414 = vadd.f32 %v412, 1e-06
        %v415 = vrsqrt.pop %v413
        %v416 = vrsqrt.pop %v414
        %v417 = vmul.f32 %v397, %v415
        %v418 = vmul.f32 %v398, %v415
        %v419 = vmul.f32 %v399, %v416
        %v420 = vmul.f32 %v400, %v416
        %v422 = vlaneseq
        %v423 = vshrl.u32 %v422, 7
        %v424 = vsub.s32 0, %v423
        %v425 = vrot.slane %v386, %v424
        %v426 = vlaneseq
        %v427 = vshrl.u32 %v426, 7
        %v428 = vsub.s32 1, %v427
        %v429 = vrot.slane %v386, %v428
        %v432 = vmul.f32 %v417, %v425
        %v433 = vmul.f32 %v418, %v429
        %v434 = vmul.f32 %v419, %v425
        %v435 = vmul.f32 %v420, %v429
        %v437 = vlaneseq
        %v438 = vshrl.u32 %v437, 7
        %v439 = vsub.s32 0, %v438
        %v440 = vrot.slane %v387, %v439
        %v441 = vlaneseq
        %v442 = vshrl.u32 %v441, 7
        %v443 = vsub.s32 1, %v442
        %v444 = vrot.slane %v387, %v443
        %v447 = vadd.f32 %v432, %v440
        %v448 = vadd.f32 %v433, %v444
        %v449 = vadd.f32 %v434, %v440
        %v450 = vadd.f32 %v435, %v444
        %v451 = vpack.c.bf16 %v449, %v447
        %v452 = vpack.c.bf16 %v450, %v448
        %v453 = vld [vmem:[#allocation8] sm:$0xff]
        %v454 = vld [vmem:[#allocation8 + $0x8] sm:$0xff]
        %v455 = vld [vmem:[#allocation8 + $0x10] sm:$0xff]
        %v456 = vld [vmem:[#allocation8 + $0x18] sm:$0xff]
        %v457 = vld [vmem:[#allocation8 + $0x20] sm:$0xff]
        %v458 = vld [vmem:[#allocation8 + $0x28] sm:$0xff]
        %v459 = vld [vmem:[#allocation8 + $0x30] sm:$0xff]
        %v460 = vld [vmem:[#allocation8 + $0x38] sm:$0xff]
        %v461 = vld [vmem:[#allocation8 + $0x40] sm:$0xff]
        %v462 = vld [vmem:[#allocation8 + $0x48] sm:$0xff]
        %v463 = vld [vmem:[#allocation8 + $0x50] sm:$0xff]
        %v464 = vld [vmem:[#allocation8 + $0x58] sm:$0xff]
        %v465 = vld [vmem:[#allocation8 + $0x60] sm:$0xff]
        %v466 = vld [vmem:[#allocation8 + $0x68] sm:$0xff]
        %v467 = vld [vmem:[#allocation8 + $0x70] sm:$0xff]
        %v468 = vld [vmem:[#allocation8 + $0x78] sm:$0xff]
        %v469 = vld [vmem:[#allocation8 + $0x80] sm:$0xff]
        %v470 = vld [vmem:[#allocation8 + $0x88] sm:$0xff]
        %v471 = vld [vmem:[#allocation8 + $0x90] sm:$0xff]
        %v472 = vld [vmem:[#allocation8 + $0x98] sm:$0xff]
        %v473 = vld [vmem:[#allocation8 + $0xa0] sm:$0xff]
        %v474 = vld [vmem:[#allocation8 + $0xa8] sm:$0xff]
        %v475 = vld [vmem:[#allocation8 + $0xb0] sm:$0xff]
        %v476 = vld [vmem:[#allocation8 + $0xb8] sm:$0xff]
        %v477 = vld [vmem:[#allocation8 + $0xc0] sm:$0xff]
        %v478 = vld [vmem:[#allocation8 + $0xc8] sm:$0xff]
        %v479 = vld [vmem:[#allocation8 + $0xd0] sm:$0xff]
        %v480 = vld [vmem:[#allocation8 + $0xd8] sm:$0xff]
        %v481 = vld [vmem:[#allocation8 + $0xe0] sm:$0xff]
        %v482 = vld [vmem:[#allocation8 + $0xe8] sm:$0xff]
        %v483 = vld [vmem:[#allocation8 + $0xf0] sm:$0xff]
        %v484 = vld [vmem:[#allocation8 + $0xf8] sm:$0xff]
        %v485 = vld [vmem:[#allocation8 + $0x100] sm:$0xff]
        %v486 = vld [vmem:[#allocation8 + $0x108] sm:$0xff]
        %v487 = vld [vmem:[#allocation8 + $0x110] sm:$0xff]
        %v488 = vld [vmem:[#allocation8 + $0x118] sm:$0xff]
        %v489 = vld [vmem:[#allocation8 + $0x120] sm:$0xff]
        %v490 = vld [vmem:[#allocation8 + $0x128] sm:$0xff]
        %v491 = vld [vmem:[#allocation8 + $0x130] sm:$0xff]
        %v492 = vld [vmem:[#allocation8 + $0x138] sm:$0xff]
        %v493 = vld [vmem:[#allocation8 + $0x140] sm:$0xff]
        %v494 = vld [vmem:[#allocation8 + $0x148] sm:$0xff]
        %v495 = vld [vmem:[#allocation8 + $0x150] sm:$0xff]
        %v496 = vld [vmem:[#allocation8 + $0x158] sm:$0xff]
        %v497 = vld [vmem:[#allocation8 + $0x160] sm:$0xff]
        %v498 = vld [vmem:[#allocation8 + $0x168] sm:$0xff]
        %v499 = vld [vmem:[#allocation8 + $0x170] sm:$0xff]
        %v500 = vld [vmem:[#allocation8 + $0x178] sm:$0xff]
        %v501 = vld [vmem:[#allocation8 + $0x180] sm:$0xff]
        %v502 = vld [vmem:[#allocation8 + $0x188] sm:$0xff]
        %v503 = vld [vmem:[#allocation8 + $0x190] sm:$0xff]
        %v504 = vld [vmem:[#allocation8 + $0x198] sm:$0xff]
        %v505 = vld [vmem:[#allocation8 + $0x1a0] sm:$0xff]
        %v506 = vld [vmem:[#allocation8 + $0x1a8] sm:$0xff]
        %v507 = vld [vmem:[#allocation8 + $0x1b0] sm:$0xff]
        %v508 = vld [vmem:[#allocation8 + $0x1b8] sm:$0xff]
        %v509 = vld [vmem:[#allocation8 + $0x1c0] sm:$0xff]
        %v510 = vld [vmem:[#allocation8 + $0x1c8] sm:$0xff]
        %v511 = vld [vmem:[#allocation8 + $0x1d0] sm:$0xff]
        %v512 = vld [vmem:[#allocation8 + $0x1d8] sm:$0xff]
        %v513 = vld [vmem:[#allocation8 + $0x1e0] sm:$0xff]
        %v514 = vld [vmem:[#allocation8 + $0x1e8] sm:$0xff]
        %v515 = vld [vmem:[#allocation8 + $0x1f0] sm:$0xff]
        %v516 = vld [vmem:[#allocation8 + $0x1f8] sm:$0xff]
        %v517 = vld [vmem:[#allocation8 + $0x200] sm:$0xff]
        %v518 = vld [vmem:[#allocation8 + $0x208] sm:$0xff]
        %v519 = vld [vmem:[#allocation8 + $0x210] sm:$0xff]
        %v520 = vld [vmem:[#allocation8 + $0x218] sm:$0xff]
        %v521 = vld [vmem:[#allocation8 + $0x220] sm:$0xff]
        %v522 = vld [vmem:[#allocation8 + $0x228] sm:$0xff]
        %v523 = vld [vmem:[#allocation8 + $0x230] sm:$0xff]
        %v524 = vld [vmem:[#allocation8 + $0x238] sm:$0xff]
        %v525 = vld [vmem:[#allocation8 + $0x240] sm:$0xff]
        %v526 = vld [vmem:[#allocation8 + $0x248] sm:$0xff]
        %v527 = vld [vmem:[#allocation8 + $0x250] sm:$0xff]
        %v528 = vld [vmem:[#allocation8 + $0x258] sm:$0xff]
        %v529 = vld [vmem:[#allocation8 + $0x260] sm:$0xff]
        %v530 = vld [vmem:[#allocation8 + $0x268] sm:$0xff]
        %v531 = vld [vmem:[#allocation8 + $0x270] sm:$0xff]
        %v532 = vld [vmem:[#allocation8 + $0x278] sm:$0xff]
        %v533 = vld [vmem:[#allocation8 + $0x280] sm:$0xff]
        %v534 = vld [vmem:[#allocation8 + $0x288] sm:$0xff]
        %v535 = vld [vmem:[#allocation8 + $0x290] sm:$0xff]
        %v536 = vld [vmem:[#allocation8 + $0x298] sm:$0xff]
        %v537 = vld [vmem:[#allocation8 + $0x2a0] sm:$0xff]
        %v538 = vld [vmem:[#allocation8 + $0x2a8] sm:$0xff]
        %v539 = vld [vmem:[#allocation8 + $0x2b0] sm:$0xff]
        %v540 = vld [vmem:[#allocation8 + $0x2b8] sm:$0xff]
        %v541 = vld [vmem:[#allocation8 + $0x2c0] sm:$0xff]
        %v542 = vld [vmem:[#allocation8 + $0x2c8] sm:$0xff]
        %v543 = vld [vmem:[#allocation8 + $0x2d0] sm:$0xff]
        %v544 = vld [vmem:[#allocation8 + $0x2d8] sm:$0xff]
        %v545 = vld [vmem:[#allocation8 + $0x2e0] sm:$0xff]
        %v546 = vld [vmem:[#allocation8 + $0x2e8] sm:$0xff]
        %v547 = vld [vmem:[#allocation8 + $0x2f0] sm:$0xff]
        %v548 = vld [vmem:[#allocation8 + $0x2f8] sm:$0xff]
        %v549 = vld [vmem:[%s4] sm:$0x3f]
        %v551 = vlaneseq
        %v552 = vshrl.u32 %v551, 7
        %v553 = vsub.s32 0, %v552
        %v554 = vrot.slane %v549, %v553
        %v555 = vlaneseq
        %v556 = vshrl.u32 %v555, 7
        %v557 = vsub.s32 1, %v556
        %v558 = vrot.slane %v549, %v557
        %v559 = vlaneseq
        %v560 = vshrl.u32 %v559, 7
        %v561 = vsub.s32 2, %v560
        %v562 = vrot.slane %v549, %v561
        %v563 = vlaneseq
        %v564 = vshrl.u32 %v563, 7
        %v565 = vsub.s32 3, %v564
        %v566 = vrot.slane %v549, %v565
        %v567 = vlaneseq
        %v568 = vshrl.u32 %v567, 7
        %v569 = vsub.s32 4, %v568
        %v570 = vrot.slane %v549, %v569
        %v571 = vlaneseq
        %v572 = vshrl.u32 %v571, 7
        %v573 = vsub.s32 5, %v572
        %v574 = vrot.slane %v549, %v573
        %v677 = vunpack.c.l.b16 %v453
        %v678 = vunpack.c.h.b16 %v453
        %v679 = vunpack.c.l.b16 %v454
        %v680 = vunpack.c.h.b16 %v454
        %v681 = vunpack.c.l.b16 %v455
        %v682 = vunpack.c.h.b16 %v455
        %v683 = vunpack.c.l.b16 %v456
        %v684 = vunpack.c.h.b16 %v456
        %v685 = vunpack.c.l.b16 %v457
        %v686 = vunpack.c.h.b16 %v457
        %v687 = vunpack.c.l.b16 %v458
        %v688 = vunpack.c.h.b16 %v458
        %v689 = vunpack.c.l.b16 %v459
        %v690 = vunpack.c.h.b16 %v459
        %v691 = vunpack.c.l.b16 %v460
        %v692 = vunpack.c.h.b16 %v460
        %v693 = vunpack.c.l.b16 %v461
        %v694 = vunpack.c.h.b16 %v461
        %v695 = vunpack.c.l.b16 %v462
        %v696 = vunpack.c.h.b16 %v462
        %v697 = vunpack.c.l.b16 %v463
        %v698 = vunpack.c.h.b16 %v463
        %v699 = vunpack.c.l.b16 %v464
        %v700 = vunpack.c.h.b16 %v464
        %v701 = vunpack.c.l.b16 %v465
        %v702 = vunpack.c.h.b16 %v465
        %v703 = vunpack.c.l.b16 %v466
        %v704 = vunpack.c.h.b16 %v466
        %v705 = vunpack.c.l.b16 %v467
        %v706 = vunpack.c.h.b16 %v467
        %v707 = vunpack.c.l.b16 %v468
        %v708 = vunpack.c.h.b16 %v468
        %v709 = vunpack.c.l.b16 %v469
        %v710 = vunpack.c.h.b16 %v469
        %v711 = vunpack.c.l.b16 %v470
        %v712 = vunpack.c.h.b16 %v470
        %v713 = vunpack.c.l.b16 %v471
        %v714 = vunpack.c.h.b16 %v471
        %v715 = vunpack.c.l.b16 %v472
        %v716 = vunpack.c.h.b16 %v472
        %v717 = vunpack.c.l.b16 %v473
        %v718 = vunpack.c.h.b16 %v473
        %v719 = vunpack.c.l.b16 %v474
        %v720 = vunpack.c.h.b16 %v474
        %v721 = vunpack.c.l.b16 %v475
        %v722 = vunpack.c.h.b16 %v475
        %v723 = vunpack.c.l.b16 %v476
        %v724 = vunpack.c.h.b16 %v476
        %v725 = vunpack.c.l.b16 %v477
        %v726 = vunpack.c.h.b16 %v477
        %v727 = vunpack.c.l.b16 %v478
        %v728 = vunpack.c.h.b16 %v478
        %v729 = vunpack.c.l.b16 %v479
        %v730 = vunpack.c.h.b16 %v479
        %v731 = vunpack.c.l.b16 %v480
        %v732 = vunpack.c.h.b16 %v480
        %v733 = vunpack.c.l.b16 %v481
        %v734 = vunpack.c.h.b16 %v481
        %v735 = vunpack.c.l.b16 %v482
        %v736 = vunpack.c.h.b16 %v482
        %v737 = vunpack.c.l.b16 %v483
        %v738 = vunpack.c.h.b16 %v483
        %v739 = vunpack.c.l.b16 %v484
        %v740 = vunpack.c.h.b16 %v484
        %v741 = vunpack.c.l.b16 %v485
        %v742 = vunpack.c.h.b16 %v485
        %v743 = vunpack.c.l.b16 %v486
        %v744 = vunpack.c.h.b16 %v486
        %v745 = vunpack.c.l.b16 %v487
        %v746 = vunpack.c.h.b16 %v487
        %v747 = vunpack.c.l.b16 %v488
        %v748 = vunpack.c.h.b16 %v488
        %v749 = vunpack.c.l.b16 %v489
        %v750 = vunpack.c.h.b16 %v489
        %v751 = vunpack.c.l.b16 %v490
        %v752 = vunpack.c.h.b16 %v490
        %v753 = vunpack.c.l.b16 %v491
        %v754 = vunpack.c.h.b16 %v491
        %v755 = vunpack.c.l.b16 %v492
        %v756 = vunpack.c.h.b16 %v492
        %v757 = vunpack.c.l.b16 %v493
        %v758 = vunpack.c.h.b16 %v493
        %v759 = vunpack.c.l.b16 %v494
        %v760 = vunpack.c.h.b16 %v494
        %v761 = vunpack.c.l.b16 %v495
        %v762 = vunpack.c.h.b16 %v495
        %v763 = vunpack.c.l.b16 %v496
        %v764 = vunpack.c.h.b16 %v496
        %v765 = vunpack.c.l.b16 %v497
        %v766 = vunpack.c.h.b16 %v497
        %v767 = vunpack.c.l.b16 %v498
        %v768 = vunpack.c.h.b16 %v498
        %v769 = vunpack.c.l.b16 %v499
        %v770 = vunpack.c.h.b16 %v499
        %v771 = vunpack.c.l.b16 %v500
        %v772 = vunpack.c.h.b16 %v500
        %v773 = vunpack.c.l.b16 %v501
        %v774 = vunpack.c.h.b16 %v501
        %v775 = vunpack.c.l.b16 %v502
        %v776 = vunpack.c.h.b16 %v502
        %v777 = vunpack.c.l.b16 %v503
        %v778 = vunpack.c.h.b16 %v503
        %v779 = vunpack.c.l.b16 %v504
        %v780 = vunpack.c.h.b16 %v504
        %v781 = vunpack.c.l.b16 %v505
        %v782 = vunpack.c.h.b16 %v505
        %v783 = vunpack.c.l.b16 %v506
        %v784 = vunpack.c.h.b16 %v506
        %v785 = vunpack.c.l.b16 %v507
        %v786 = vunpack.c.h.b16 %v507
        %v787 = vunpack.c.l.b16 %v508
        %v788 = vunpack.c.h.b16 %v508
        %v789 = vunpack.c.l.b16 %v509
        %v790 = vunpack.c.h.b16 %v509
        %v791 = vunpack.c.l.b16 %v510
        %v792 = vunpack.c.h.b16 %v510
        %v793 = vunpack.c.l.b16 %v511
        %v794 = vunpack.c.h.b16 %v511
        %v795 = vunpack.c.l.b16 %v512
        %v796 = vunpack.c.h.b16 %v512
        %v797 = vunpack.c.l.b16 %v513
        %v798 = vunpack.c.h.b16 %v513
        %v799 = vunpack.c.l.b16 %v514
        %v800 = vunpack.c.h.b16 %v514
        %v801 = vunpack.c.l.b16 %v515
        %v802 = vunpack.c.h.b16 %v515
        %v803 = vunpack.c.l.b16 %v516
        %v804 = vunpack.c.h.b16 %v516
        %v805 = vunpack.c.l.b16 %v517
        %v806 = vunpack.c.h.b16 %v517
        %v807 = vunpack.c.l.b16 %v518
        %v808 = vunpack.c.h.b16 %v518
        %v809 = vunpack.c.l.b16 %v519
        %v810 = vunpack.c.h.b16 %v519
        %v811 = vunpack.c.l.b16 %v520
        %v812 = vunpack.c.h.b16 %v520
        %v813 = vunpack.c.l.b16 %v521
        %v814 = vunpack.c.h.b16 %v521
        %v815 = vunpack.c.l.b16 %v522
        %v816 = vunpack.c.h.b16 %v522
        %v817 = vunpack.c.l.b16 %v523
        %v818 = vunpack.c.h.b16 %v523
        %v819 = vunpack.c.l.b16 %v524
        %v820 = vunpack.c.h.b16 %v524
        %v821 = vunpack.c.l.b16 %v525
        %v822 = vunpack.c.h.b16 %v525
        %v823 = vunpack.c.l.b16 %v526
        %v824 = vunpack.c.h.b16 %v526
        %v825 = vunpack.c.l.b16 %v527
        %v826 = vunpack.c.h.b16 %v527
        %v827 = vunpack.c.l.b16 %v528
        %v828 = vunpack.c.h.b16 %v528
        %v829 = vunpack.c.l.b16 %v529
        %v830 = vunpack.c.h.b16 %v529
        %v831 = vunpack.c.l.b16 %v530
        %v832 = vunpack.c.h.b16 %v530
        %v833 = vunpack.c.l.b16 %v531
        %v834 = vunpack.c.h.b16 %v531
        %v835 = vunpack.c.l.b16 %v532
        %v836 = vunpack.c.h.b16 %v532
        %v837 = vunpack.c.l.b16 %v533
        %v838 = vunpack.c.h.b16 %v533
        %v839 = vunpack.c.l.b16 %v534
        %v840 = vunpack.c.h.b16 %v534
        %v841 = vunpack.c.l.b16 %v535
        %v842 = vunpack.c.h.b16 %v535
        %v843 = vunpack.c.l.b16 %v536
        %v844 = vunpack.c.h.b16 %v536
        %v845 = vunpack.c.l.b16 %v537
        %v846 = vunpack.c.h.b16 %v537
        %v847 = vunpack.c.l.b16 %v538
        %v848 = vunpack.c.h.b16 %v538
        %v849 = vunpack.c.l.b16 %v539
        %v850 = vunpack.c.h.b16 %v539
        %v851 = vunpack.c.l.b16 %v540
        %v852 = vunpack.c.h.b16 %v540
        %v853 = vunpack.c.l.b16 %v541
        %v854 = vunpack.c.h.b16 %v541
        %v855 = vunpack.c.l.b16 %v542
        %v856 = vunpack.c.h.b16 %v542
        %v857 = vunpack.c.l.b16 %v543
        %v858 = vunpack.c.h.b16 %v543
        %v859 = vunpack.c.l.b16 %v544
        %v860 = vunpack.c.h.b16 %v544
        %v861 = vunpack.c.l.b16 %v545
        %v862 = vunpack.c.h.b16 %v545
        %v863 = vunpack.c.l.b16 %v546
        %v864 = vunpack.c.h.b16 %v546
        %v865 = vunpack.c.l.b16 %v547
        %v866 = vunpack.c.h.b16 %v547
        %v867 = vunpack.c.l.b16 %v548
        %v868 = vunpack.c.h.b16 %v548
        %v869 = vpack.c.b16 %v683, %v677
        %v870 = vpack.c.b16 %v684, %v678
        %v871 = vpack.c.b16 %v685, %v679
        %v872 = vpack.c.b16 %v686, %v680
        %v873 = vpack.c.b16 %v687, %v681
        %v874 = vpack.c.b16 %v688, %v682
        %v875 = vpack.c.b16 %v695, %v689
        %v876 = vpack.c.b16 %v696, %v690
        %v877 = vpack.c.b16 %v697, %v691
        %v878 = vpack.c.b16 %v698, %v692
        %v879 = vpack.c.b16 %v699, %v693
        %v880 = vpack.c.b16 %v700, %v694
        %v881 = vpack.c.b16 %v707, %v701
        %v882 = vpack.c.b16 %v708, %v702
        %v883 = vpack.c.b16 %v709, %v703
        %v884 = vpack.c.b16 %v710, %v704
        %v885 = vpack.c.b16 %v711, %v705
        %v886 = vpack.c.b16 %v712, %v706
        %v887 = vpack.c.b16 %v719, %v713
        %v888 = vpack.c.b16 %v720, %v714
        %v889 = vpack.c.b16 %v721, %v715
        %v890 = vpack.c.b16 %v722, %v716
        %v891 = vpack.c.b16 %v723, %v717
        %v892 = vpack.c.b16 %v724, %v718
        %v893 = vpack.c.b16 %v731, %v725
        %v894 = vpack.c.b16 %v732, %v726
        %v895 = vpack.c.b16 %v733, %v727
        %v896 = vpack.c.b16 %v734, %v728
        %v897 = vpack.c.b16 %v735, %v729
        %v898 = vpack.c.b16 %v736, %v730
        %v899 = vpack.c.b16 %v743, %v737
        %v900 = vpack.c.b16 %v744, %v738
        %v901 = vpack.c.b16 %v745, %v739
        %v902 = vpack.c.b16 %v746, %v740
        %v903 = vpack.c.b16 %v747, %v741
        %v904 = vpack.c.b16 %v748, %v742
        %v905 = vpack.c.b16 %v755, %v749
        %v906 = vpack.c.b16 %v756, %v750
        %v907 = vpack.c.b16 %v757, %v751
        %v908 = vpack.c.b16 %v758, %v752
        %v909 = vpack.c.b16 %v759, %v753
        %v910 = vpack.c.b16 %v760, %v754
        %v911 = vpack.c.b16 %v767, %v761
        %v912 = vpack.c.b16 %v768, %v762
        %v913 = vpack.c.b16 %v769, %v763
        %v914 = vpack.c.b16 %v770, %v764
        %v915 = vpack.c.b16 %v771, %v765
        %v916 = vpack.c.b16 %v772, %v766
        %v917 = vpack.c.b16 %v779, %v773
        %v918 = vpack.c.b16 %v780, %v774
        %v919 = vpack.c.b16 %v781, %v775
        %v920 = vpack.c.b16 %v782, %v776
        %v921 = vpack.c.b16 %v783, %v777
        %v922 = vpack.c.b16 %v784, %v778
        %v923 = vpack.c.b16 %v791, %v785
        %v924 = vpack.c.b16 %v792, %v786
        %v925 = vpack.c.b16 %v793, %v787
        %v926 = vpack.c.b16 %v794, %v788
        %v927 = vpack.c.b16 %v795, %v789
        %v928 = vpack.c.b16 %v796, %v790
        %v929 = vpack.c.b16 %v803, %v797
        %v930 = vpack.c.b16 %v804, %v798
        %v931 = vpack.c.b16 %v805, %v799
        %v932 = vpack.c.b16 %v806, %v800
        %v933 = vpack.c.b16 %v807, %v801
        %v934 = vpack.c.b16 %v808, %v802
        %v935 = vpack.c.b16 %v815, %v809
        %v936 = vpack.c.b16 %v816, %v810
        %v937 = vpack.c.b16 %v817, %v811
        %v938 = vpack.c.b16 %v818, %v812
        %v939 = vpack.c.b16 %v819, %v813
        %v940 = vpack.c.b16 %v820, %v814
        %v941 = vpack.c.b16 %v827, %v821
        %v942 = vpack.c.b16 %v828, %v822
        %v943 = vpack.c.b16 %v829, %v823
        %v944 = vpack.c.b16 %v830, %v824
        %v945 = vpack.c.b16 %v831, %v825
        %v946 = vpack.c.b16 %v832, %v826
        %v947 = vpack.c.b16 %v839, %v833
        %v948 = vpack.c.b16 %v840, %v834
        %v949 = vpack.c.b16 %v841, %v835
        %v950 = vpack.c.b16 %v842, %v836
        %v951 = vpack.c.b16 %v843, %v837
        %v952 = vpack.c.b16 %v844, %v838
        %v953 = vpack.c.b16 %v851, %v845
        %v954 = vpack.c.b16 %v852, %v846
        %v955 = vpack.c.b16 %v853, %v847
        %v956 = vpack.c.b16 %v854, %v848
        %v957 = vpack.c.b16 %v855, %v849
        %v958 = vpack.c.b16 %v856, %v850
        %v959 = vpack.c.b16 %v863, %v857
        %v960 = vpack.c.b16 %v864, %v858
        %v961 = vpack.c.b16 %v865, %v859
        %v962 = vpack.c.b16 %v866, %v860
        %v963 = vpack.c.b16 %v867, %v861
        %v964 = vpack.c.b16 %v868, %v862
        %1061 = vmatprep.subr.bf16.mxu0 %v912
        %1062 = vmatpush1.bf16.msra.mxu0 %v911
        %1063 = vmatprep.subr.bf16.mxu0 %v906
        %1064 = vmatpush1.bf16.msra.mxu0 %v905
        %1065 = vmatprep.subr.bf16.mxu0 %v900
        %1066 = vmatpush1.bf16.msra.mxu0 %v899
        %1067 = vmatprep.subr.bf16.mxu0 %v894
        %1068 = vmatpush1.bf16.msra.mxu0 %v893
        %1069 = vmatprep.subr.bf16.mxu0 %v888
        %1070 = vmatpush1.bf16.msra.mxu0 %v887
        %1071 = vmatprep.subr.bf16.mxu0 %v882
        %1072 = vmatpush1.bf16.msra.mxu0 %v881
        %1073 = vmatprep.subr.bf16.mxu0 %v876
        %1074 = vmatpush1.bf16.msra.mxu0 %v875
        %1075 = vmatprep.subr.bf16.mxu0 %v870
        %1076 = vmatpush1.bf16.msra.mxu0 %v869
        %1077 = vmatprep.subr.bf16.mxu0 %v960
        %1078 = vmatpush2.bf16.msra.mxu0 %v959
        %1079 = vmatprep.subr.bf16.mxu0 %v954
        %1080 = vmatpush2.bf16.msra.mxu0 %v953
        %1081 = vmatprep.subr.bf16.mxu0 %v948
        %1082 = vmatpush2.bf16.msra.mxu0 %v947
        %1083 = vmatprep.subr.bf16.mxu0 %v942
        %1084 = vmatpush2.bf16.msra.mxu0 %v941
        %1085 = vmatprep.subr.bf16.mxu0 %v936
        %1086 = vmatpush2.bf16.msra.mxu0 %v935
        %1087 = vmatprep.subr.bf16.mxu0 %v930
        %1088 = vmatpush2.bf16.msra.mxu0 %v929
        %1089 = vmatprep.subr.bf16.mxu0 %v924
        %1090 = vmatpush2.bf16.msra.mxu0 %v923
        %1091 = vmatprep.subr.bf16.mxu0 %v918
        %1092 = vmatpush2.bf16.msra.mxu0 %v917
        %1093 = vmatprep.mubr.bf16.mxu0 %v452
        %1094 = vmatmul.mubr.bf16.gmra.mxu0 %v451
        %v1095 = vpop.f32.mrf.mxu0
        %v1096 = vadd.f32 %v554, %v1095
        %v1097 = vpop.f32.mrf.mxu0
        %v1098 = vadd.f32 %v558, %v1097
        %v1099 = vpop.f32.mrf.mxu0
        %v1100 = vadd.f32 %v554, %v1099
        %v1101 = vpop.f32.mrf.mxu0
        %v1102 = vadd.f32 %v558, %v1101
        %1103 = vdwg.mxu0
        %1104 = vmatprep.subr.bf16.mxu0 %v914
        %1105 = vmatpush1.bf16.msra.mxu0 %v913
        %1106 = vmatprep.subr.bf16.mxu0 %v908
        %1107 = vmatpush1.bf16.msra.mxu0 %v907
        %1108 = vmatprep.subr.bf16.mxu0 %v902
        %1109 = vmatpush1.bf16.msra.mxu0 %v901
        %1110 = vmatprep.subr.bf16.mxu0 %v896
        %1111 = vmatpush1.bf16.msra.mxu0 %v895
        %1112 = vmatprep.subr.bf16.mxu0 %v890
        %1113 = vmatpush1.bf16.msra.mxu0 %v889
        %1114 = vmatprep.subr.bf16.mxu0 %v884
        %1115 = vmatpush1.bf16.msra.mxu0 %v883
        %1116 = vmatprep.subr.bf16.mxu0 %v878
        %1117 = vmatpush1.bf16.msra.mxu0 %v877
        %1118 = vmatprep.subr.bf16.mxu0 %v872
        %1119 = vmatpush1.bf16.msra.mxu0 %v871
        %1120 = vmatprep.subr.bf16.mxu0 %v962
        %1121 = vmatpush2.bf16.msra.mxu0 %v961
        %1122 = vmatprep.subr.bf16.mxu0 %v956
        %1123 = vmatpush2.bf16.msra.mxu0 %v955
        %1124 = vmatprep.subr.bf16.mxu0 %v950
        %1125 = vmatpush2.bf16.msra.mxu0 %v949
        %1126 = vmatprep.subr.bf16.mxu0 %v944
        %1127 = vmatpush2.bf16.msra.mxu0 %v943
        %1128 = vmatprep.subr.bf16.mxu0 %v938
        %1129 = vmatpush2.bf16.msra.mxu0 %v937
        %1130 = vmatprep.subr.bf16.mxu0 %v932
        %1131 = vmatpush2.bf16.msra.mxu0 %v931
        %1132 = vmatprep.subr.bf16.mxu0 %v926
        %1133 = vmatpush2.bf16.msra.mxu0 %v925
        %1134 = vmatprep.subr.bf16.mxu0 %v920
        %1135 = vmatpush2.bf16.msra.mxu0 %v919
        %1136 = vmatprep.mubr.bf16.mxu0 %v452
        %1137 = vmatmul.mubr.bf16.gmra.mxu0 %v451
        %v1138 = vpop.f32.mrf.mxu0
        %v1139 = vadd.f32 %v562, %v1138
        %v1140 = vpop.f32.mrf.mxu0
        %v1141 = vadd.f32 %v566, %v1140
        %v1142 = vpop.f32.mrf.mxu0
        %v1143 = vadd.f32 %v562, %v1142
        %v1144 = vpop.f32.mrf.mxu0
        %v1145 = vadd.f32 %v566, %v1144
        %1146 = vdwg.mxu0
        %1147 = vmatprep.subr.bf16.mxu0 %v916
        %1148 = vmatpush1.bf16.msra.mxu0 %v915
        %1149 = vmatprep.subr.bf16.mxu0 %v910
        %1150 = vmatpush1.bf16.msra.mxu0 %v909
        %1151 = vmatprep.subr.bf16.mxu0 %v904
        %1152 = vmatpush1.bf16.msra.mxu0 %v903
        %1153 = vmatprep.subr.bf16.mxu0 %v898
        %1154 = vmatpush1.bf16.msra.mxu0 %v897
        %1155 = vmatprep.subr.bf16.mxu0 %v892
        %1156 = vmatpush1.bf16.msra.mxu0 %v891
        %1157 = vmatprep.subr.bf16.mxu0 %v886
        %1158 = vmatpush1.bf16.msra.mxu0 %v885
        %1159 = vmatprep.subr.bf16.mxu0 %v880
        %1160 = vmatpush1.bf16.msra.mxu0 %v879
        %1161 = vmatprep.subr.bf16.mxu0 %v874
        %1162 = vmatpush1.bf16.msra.mxu0 %v873
        %1163 = vmatprep.subr.bf16.mxu0 %v964
        %1164 = vmatpush2.bf16.msra.mxu0 %v963
        %1165 = vmatprep.subr.bf16.mxu0 %v958
        %1166 = vmatpush2.bf16.msra.mxu0 %v957
        %1167 = vmatprep.subr.bf16.mxu0 %v952
        %1168 = vmatpush2.bf16.msra.mxu0 %v951
        %1169 = vmatprep.subr.bf16.mxu0 %v946
        %1170 = vmatpush2.bf16.msra.mxu0 %v945
        %1171 = vmatprep.subr.bf16.mxu0 %v940
        %1172 = vmatpush2.bf16.msra.mxu0 %v939
        %1173 = vmatprep.subr.bf16.mxu0 %v934
        %1174 = vmatpush2.bf16.msra.mxu0 %v933
        %1175 = vmatprep.subr.bf16.mxu0 %v928
        %1176 = vmatpush2.bf16.msra.mxu0 %v927
        %1177 = vmatprep.subr.bf16.mxu0 %v922
        %1178 = vmatpush2.bf16.msra.mxu0 %v921
        %1179 = vmatprep.mubr.bf16.mxu0 %v452
        %1180 = vmatmul.mubr.bf16.gmra.mxu0 %v451
        %v1181 = vpop.f32.mrf.mxu0
        %v1182 = vadd.f32 %v570, %v1181
        %v1183 = vpop.f32.mrf.mxu0
        %v1184 = vadd.f32 %v574, %v1183
        %v1185 = vpop.f32.mrf.mxu0
        %v1186 = vadd.f32 %v570, %v1185
        %v1187 = vpop.f32.mrf.mxu0
        %v1188 = vadd.f32 %v574, %v1187
        %1189 = vdwg.mxu0
        %v1190 = vpack.c.bf16 %v1100, %v1096
        %v1191 = vpack.c.bf16 %v1102, %v1098
        %v1194 = vunpack.c.l.b16 %v1190
        %v1195 = vunpack.c.l.b16 %v1191
        %v1196 = vunpack.c.h.b16 %v1190
        %v1197 = vunpack.c.h.b16 %v1191
        %v1198 = vpack.c.b16 %v1195, %v1194
        %v1199 = vpack.c.b16 %v1197, %v1196
        %1202 = vst [vmem:[%s363] sm:$0xff] %v1198
        %1203 = vst [vmem:[%s363 + $0x8] sm:$0xff] %v1199
        %v1204 = vpack.c.bf16 %v1143, %v1139
        %v1205 = vpack.c.bf16 %v1145, %v1141
        %v1208 = vunpack.c.l.b16 %v1204
        %v1209 = vunpack.c.l.b16 %v1205
        %v1210 = vunpack.c.h.b16 %v1204
        %v1211 = vunpack.c.h.b16 %v1205
        %v1212 = vpack.c.b16 %v1209, %v1208
        %v1213 = vpack.c.b16 %v1211, %v1210
        %1216 = vst [vmem:[%s370] sm:$0xff] %v1212
        %1217 = vst [vmem:[%s370 + $0x8] sm:$0xff] %v1213
        %v1218 = vpack.c.bf16 %v1186, %v1182
        %v1219 = vpack.c.bf16 %v1188, %v1184
        %v1222 = vunpack.c.l.b16 %v1218
        %v1223 = vunpack.c.l.b16 %v1219
        %v1224 = vunpack.c.h.b16 %v1218
        %v1225 = vunpack.c.h.b16 %v1219
        %v1226 = vpack.c.b16 %v1223, %v1222
        %v1227 = vpack.c.b16 %v1225, %v1224
        %1230 = vst [vmem:[%s377] sm:$0xff] %v1226
        %1231 = vst [vmem:[%s377 + $0x8] sm:$0xff] %v1227
        %s1232 = sand.u32 %s164, 1
        %s1233 = scalar_lea.sflag [#allocation4], %s1232
        %s1234 = sand.u32 %s164, 1
        %s1235 = smul.addr %s1234, 16
        %s1236 = scalar_lea.vmem [#allocation10], %s1235
        %s1237 = sand.u32 %s30, 1
        %s1238 = scalar_lea.sflag [#allocation12], %s1237
        %s1239 = sand.u32 %s192, 1
        %s1240 = smul.addr %s1239, 16
        %s1241 = scalar_lea.vmem [#allocation11], %s1240
        %s1242 = sand.u32 %s30, 1
        %s1243 = scalar_lea.sflag [#allocation12], %s1242
        %s1244 = sand.u32 %s220, 1
        %s1245 = smul.addr %s1244, 16
        %s1246 = scalar_lea.vmem [#allocation13], %s1245
        // Predicated region
        $region57: #{tpu_custom_call.1} parent=39 // pred_check
          %p1247 = pneg %p174
        $region58: #{tpu_custom_call.1} parent=39 // pred_check_branch
          %1249 = sbr.rel (%p1247) target = $region60
        $region59: #{tpu_custom_call.1} parent=39 // pred_region
          %s1250 = smul.u32 2, %s35
          %s1252 = ssub.s32 256, 256
          %1253 = vsyncadd %s1233, %s1252
          %s1254 = smul.addr %s1250, 2
          %s1255 = smul.addr %s34, 4
          %s1256 = sadd.s32 %s1254, %s1255
          %s1257 = smul.addr %s1256, 64
          %s1258 = scalar_lea.hbm %s5, %s1257
          %s1259 = sshll.u32 %s1236, 4
          %s1260 = int_to_ptr.vmem [resolvable:$true] %s1259
          %1265 = dma.vmem_to_hbm [thread:$0]  %s1260, 256, %s1258, %s1233, 128, 128, 8
        $region60: #{tpu_custom_call.1} parent=39 // pred_fallthru
          _
        // Predicated region
        $region61: #{tpu_custom_call.1} parent=39 // pred_check
          %p1266 = pneg %p202
        $region62: #{tpu_custom_call.1} parent=39 // pred_check_branch
          %1268 = sbr.rel (%p1266) target = $region64
        $region63: #{tpu_custom_call.1} parent=39 // pred_region
          %s1269 = smul.u32 2, %s35
          %s1271 = ssub.s32 256, 256
          %1272 = vsyncadd %s1238, %s1271
          %s1273 = smul.addr %s1269, 2
          %s1274 = smul.addr %s34, 4
          %s1275 = sadd.s32 %s1273, %s1274
          %s1276 = smul.addr %s1275, 64
          %s1277 = scalar_lea.hbm %s6, %s1276
          %s1278 = sshll.u32 %s1241, 4
          %s1279 = int_to_ptr.vmem [resolvable:$true] %s1278
          %1284 = dma.vmem_to_hbm [thread:$0]  %s1279, 256, %s1277, %s1238, 128, 128, 8
        $region64: #{tpu_custom_call.1} parent=39 // pred_fallthru
          _
        // Predicated region
        $region65: #{tpu_custom_call.1} parent=39 // pred_check
          %p1285 = pneg %p230
        $region66: #{tpu_custom_call.1} parent=39 // pred_check_branch
          %1287 = sbr.rel (%p1285) target = $region68
        $region67: #{tpu_custom_call.1} parent=39 // pred_region
          %s1288 = smul.u32 2, %s35
          %s1290 = ssub.s32 256, 256
          %1291 = vsyncadd %s1243, %s1290
          %s1292 = smul.addr %s1288, 2
          %s1293 = smul.addr %s34, 4
          %s1294 = sadd.s32 %s1292, %s1293
          %s1295 = smul.addr %s1294, 64
          %s1296 = scalar_lea.hbm %s7, %s1295
          %s1297 = sshll.u32 %s1246, 4
          %s1298 = int_to_ptr.vmem [resolvable:$true] %s1297
          %1303 = dma.vmem_to_hbm [thread:$0]  %s1298, 256, %s1296, %s1243, 128, 128, 8
        $region68: #{tpu_custom_call.1} parent=39 // pred_fallthru
          _
      $region40: #{tpu_custom_call.1} parent=5 // pred_fallthru
        _
      %p1304 = scmp.le.s32.totalorder 2, %s25
      // Predicated region
      $region69: #{tpu_custom_call.1} parent=5 // pred_check
        %p1305 = pneg %p1304
      $region70: #{tpu_custom_call.1} parent=5 // pred_check_branch
        %1307 = sbr.rel (%p1305) target = $region72
      $region71: #{tpu_custom_call.1} parent=5 // pred_region
        %s1308 = ssub.s32 %s25, 2
        // Predicated region
        $region73: #{tpu_custom_call.1} parent=71 // pred_check
          %p1309 = pneg %p180
        $region74: #{tpu_custom_call.1} parent=71 // pred_check_branch
          %1311 = sbr.rel (%p1309) target = $region76
        $region75: #{tpu_custom_call.1} parent=71 // pred_region
          %s1312 = sand.u32 %s165, 1
          %s1313 = scalar_lea.sflag [#allocation4], %s1312
          %s1314 = sand.u32 %s165, 1
          %s1315 = smul.addr %s1314, 16
          %s1316 = scalar_lea.vmem [#allocation10], %s1315
          %1317 = dma.done %s1313, 256
        $region76: #{tpu_custom_call.1} parent=71 // pred_fallthru
          _
        // Predicated region
        $region77: #{tpu_custom_call.1} parent=71 // pred_check
          %p1318 = pneg %p208
        $region78: #{tpu_custom_call.1} parent=71 // pred_check_branch
          %1320 = sbr.rel (%p1318) target = $region80
        $region79: #{tpu_custom_call.1} parent=71 // pred_region
          %s1321 = sand.u32 %s31, 1
          %s1322 = scalar_lea.sflag [#allocation12], %s1321
          %s1323 = sand.u32 %s193, 1
          %s1324 = smul.addr %s1323, 16
          %s1325 = scalar_lea.vmem [#allocation11], %s1324
          %1326 = dma.done %s1322, 256
        $region80: #{tpu_custom_call.1} parent=71 // pred_fallthru
          _
        // Predicated region
        $region81: #{tpu_custom_call.1} parent=71 // pred_check
          %p1327 = pneg %p236
        $region82: #{tpu_custom_call.1} parent=71 // pred_check_branch
          %1329 = sbr.rel (%p1327) target = $region84
        $region83: #{tpu_custom_call.1} parent=71 // pred_region
          %s1330 = sand.u32 %s31, 1
          %s1331 = scalar_lea.sflag [#allocation12], %s1330
          %s1332 = sand.u32 %s221, 1
          %s1333 = smul.addr %s1332, 16
          %s1334 = scalar_lea.vmem [#allocation13], %s1333
          %1335 = dma.done %s1331, 256
        $region84: #{tpu_custom_call.1} parent=71 // pred_fallthru
          _
      $region72: #{tpu_custom_call.1} parent=5 // pred_fallthru
        _
    $region6: #{tpu_custom_call.1} parent=1 // loop_footer
      %s29 = sadd.s32 1, %s25
    $region7: #{tpu_custom_call.1} parent=1 // loop_footer_branch
      %24 = sbr.rel target = $region3
    $region8: #{tpu_custom_call.1} parent=1 // loop_exit
      _
    %1336 = vsyncpa [#allocation3], 1
    %s1337 = scalar_lea.sflag [#allocation3], 1
    %1338 = vsyncpa %s1337, 1
    %1339 = vsyncpa [#allocation6], 1
    %1340 = vsyncpa [#allocation9], 1
    %1341 = vsyncpa [#allocation4], 1
    %s1342 = scalar_lea.sflag [#allocation4], 1
    %1343 = vsyncpa %s1342, 1
    %1344 = vsyncpa [#allocation12], 1
    %s1345 = scalar_lea.sflag [#allocation12], 1
    %1346 = vsyncpa %s1345, 1

// kernel: tpu_custom_call.1
$region0: #{tpu_custom_call.1}
  #allocation0 [shape = 'u32[]', space=smem, size = 0x4, offset = 0x4, fixed_abs, tag = 'smem constant byte address 0x4 - core index']
  #allocation1 [shape = 'u32[144,128]{1,0:T(1,128)}', space=vmem, size = 0x12000, scoped, tag = 'internal scratch']
  %s0 = inlined_call_operand.hbm [shape: f32[2,16,256], index: 0, kind: input, shape index: {}]
  %s1 = inlined_call_operand.hbm [shape: f32[1,256], index: 1, kind: input, shape index: {}]
  %s2 = inlined_call_operand.hbm [shape: f32[1,256], index: 2, kind: input, shape index: {}]
  %s3 = inlined_call_operand.hbm [shape: bf16[256,768], index: 3, kind: input, shape index: {}]
  %s4 = inlined_call_operand.vmem [shape: f32[1,768], index: 4, kind: input, shape index: {}]
  %s5 = inlined_call_operand.hbm [shape: bf16[2,16,256], index: 5, kind: output, shape index: {0}]
  %s6 = inlined_call_operand.hbm [shape: bf16[2,16,256], index: 6, kind: output, shape index: {1}]
  %s7 = inlined_call_operand.hbm [shape: bf16[2,16,256], index: 7, kind: output, shape index: {2}]
  %8 = xla_tuple %s5, %s6, %s7
  %s9 = sld [smem:[#allocation0]]
  $region85: #{tpu_custom_call.1} parent=0
    _
  %s11 = ssub.s32 1, %s9
  %s12 = scalar_select 0, %s11, %s9
  $region1: #{tpu_custom_call.1} parent=0
    #allocation2 [shape = 'u8[32768]{0}', space=vmem, size = 0x8000, scoped, tag = 'input window, operand 0']
    #allocation3 [shape = 's32[2]{0}', space=sflag, size = 0x8, scoped, tag = 'scoped memory for tpu_custom_call.1']
    #allocation4 [shape = 's32[2]{0}', space=sflag, size = 0x8, scoped, tag = 'scoped memory for tpu_custom_call.1']
    #allocation5 [shape = 'u8[1024]{0}', space=vmem, size = 0x400, scoped, tag = 'input window, operand 1, single buffered']
    #allocation6 [shape = 's32[1]{0}', space=sflag, size = 0x4, scoped, tag = 'scoped memory for tpu_custom_call.1']
    #allocation7 [shape = 'u8[1024]{0}', space=vmem, size = 0x400, scoped, tag = 'input window, operand 2, single buffered']
    #allocation8 [shape = 'u8[393216]{0}', space=vmem, size = 0x60000, scoped, tag = 'input window, operand 3, single buffered']
    #allocation9 [shape = 's32[1]{0}', space=sflag, size = 0x4, scoped, tag = 'scoped memory for tpu_custom_call.1']
    #allocation10 [shape = 'u8[16384]{0}', space=vmem, size = 0x4000, scoped, tag = 'output window, operand 0']
    #allocation11 [shape = 'u8[16384]{0}', space=vmem, size = 0x4000, scoped, tag = 'output window, operand 1']
    #allocation12 [shape = 's32[2]{0}', space=sflag, size = 0x8, scoped, tag = 'scoped memory for tpu_custom_call.1']
    #allocation13 [shape = 'u8[16384]{0}', space=vmem, size = 0x4000, scoped, tag = 'output window, operand 2']
    %13 = vsyncpa [#allocation3], 0
    %s14 = scalar_lea.sflag [#allocation3], 1
    %15 = vsyncpa %s14, 0
    %16 = vsyncpa [#allocation6], 0
    %17 = vsyncpa [#allocation9], 0
    %18 = vsyncpa [#allocation4], 0
    %s19 = scalar_lea.sflag [#allocation4], 1
    %20 = vsyncpa %s19, 0
    %21 = vsyncpa [#allocation12], 0
    %s22 = scalar_lea.sflag [#allocation12], 1
    %23 = vsyncpa %s22, 0
    loop: start=0, step=1, limit=4
    $region2: #{tpu_custom_call.1} parent=1 // loop_pre_header
      _
    $region3: #{tpu_custom_call.1} parent=1 // loop_header
      %s25 = sphi 0, %s29
      %p26 = scmp.ge.s32.totalorder %s25, 4
      %s32 = sphi 0, %s44
      %s33 = sphi 0, %s40
      %s34 = sphi 0, %s32
      %s35 = sphi 0, %s33
      %s36 = sphi 0, %s34
      %s37 = sphi 0, %s35
      %s49 = sphi 0, %s51
      %s52 = sphi 0, %s49
      %s53 = sphi 0, %s52
      %s69 = sphi 0, %s53
      %s73 = sphi 0, %s73
      %s75 = sphi 0, %s73
      %s76 = sphi 0, %s75
      %s90 = sphi 0, %s76
      %s94 = sphi 0, %s94
      %s96 = sphi 0, %s94
      %s97 = sphi 0, %s96
      %s111 = sphi 0, %s97
      %s115 = sphi 0, %s115
      %s117 = sphi 0, %s115
      %s118 = sphi 0, %s117
      %s132 = sphi 0, %s118
      %s136 = sphi 0, %s136
      %s138 = sphi 0, %s136
      %s139 = sphi 0, %s138
      %s153 = sphi 0, %s139
      %s161 = sphi 0, %s163
      %s164 = sphi 0, %s161
      %s165 = sphi 0, %s164
      %s181 = sphi 0, %s165
      %s189 = sphi 0, %s191
      %s192 = sphi 0, %s189
      %s193 = sphi 0, %s192
      %s209 = sphi 0, %s193
      %s217 = sphi 0, %s219
      %s220 = sphi 0, %s217
      %s221 = sphi 0, %s220
      %s237 = sphi 0, %s221
    $region4: #{tpu_custom_call.1} parent=1 // loop_header_branch
      %28 = sbr.rel (%p26) target = $region8
    $region5: #{tpu_custom_call.1} parent=1 // loop_body
      %s30 = ssub.s32 %s25, 1
      %s31 = ssub.s32 %s25, 2
      %s38 = sadd.s32 1, %s33
      %p39 = scmp.ge.s32.totalorder %s38, 1
      %s40 = scalar_select %p39, 0, %s38
      %s41 = sadd.s32 1, %s32
      %s42 = scalar_select %p39, %s41, %s32
      %p43 = scmp.ge.s32.totalorder %s42, 2
      %s44 = scalar_select %p43, 0, %s42
      %s45 = ssub.s32 %s32, %s44
      %s46 = ssub.s32 %s33, %s40
      %s47 = sor.u32 %s45, %s46
      %p48 = scmp.eq.s32.totalorder %s47, 0
      %s50 = sadd.s32 %s49, 1
      %s51 = scalar_select %p48, %s49, %s50
      %p54 = pneg %p48
      %p55 = scmp.eq.s32.totalorder %s25, 1
      %p56 = por %p54, %p55
      %p57 = scmp.ne.s32.totalorder %s49, %s52
      %p58 = scmp.eq.s32.totalorder %s25, 0
      %p59 = por %p57, %p58
      %p60 = scmp.ne.s32.totalorder %s49, %s52
      %p61 = scmp.eq.s32.totalorder %s30, 1
      %p62 = por %p60, %p61
      %p63 = scmp.ne.s32.totalorder %s52, %s53
      %p64 = scmp.eq.s32.totalorder %s30, 0
      %p65 = por %p63, %p64
      %p66 = scmp.ne.s32.totalorder %s52, %s53
      %p67 = scmp.eq.s32.totalorder %s31, 1
      %p68 = por %p66, %p67
      %p70 = scmp.ne.s32.totalorder %s53, %s69
      %p71 = scmp.eq.s32.totalorder %s31, 0
      %p72 = por %p70, %p71
      %s74 = sadd.s32 %s73, 1
      %p77 = scmp.eq.s32.totalorder %s25, 1
      %p78 = scmp.ne.s32.totalorder %s73, %s75
      %p79 = scmp.eq.s32.totalorder %s25, 0
      %p80 = por %p78, %p79
      %p81 = scmp.ne.s32.totalorder %s73, %s75
      %p82 = scmp.eq.s32.totalorder %s30, 1
      %p83 = por %p81, %p82
      %p84 = scmp.ne.s32.totalorder %s75, %s76
      %p85 = scmp.eq.s32.totalorder %s30, 0
      %p86 = por %p84, %p85
      %p87 = scmp.ne.s32.totalorder %s75, %s76
      %p88 = scmp.eq.s32.totalorder %s31, 1
      %p89 = por %p87, %p88
      %p91 = scmp.ne.s32.totalorder %s76, %s90
      %p92 = scmp.eq.s32.totalorder %s31, 0
      %p93 = por %p91, %p92
      %s95 = sadd.s32 %s94, 1
      %p98 = scmp.eq.s32.totalorder %s25, 1
      %p99 = scmp.ne.s32.totalorder %s94, %s96
      %p100 = scmp.eq.s32.totalorder %s25, 0
      %p101 = por %p99, %p100
      %p102 = scmp.ne.s32.totalorder %s94, %s96
      %p103 = scmp.eq.s32.totalorder %s30, 1
      %p104 = por %p102, %p103
      %p105 = scmp.ne.s32.totalorder %s96, %s97
      %p106 = scmp.eq.s32.totalorder %s30, 0
      %p107 = por %p105, %p106
      %p108 = scmp.ne.s32.totalorder %s96, %s97
      %p109 = scmp.eq.s32.totalorder %s31, 1
      %p110 = por %p108, %p109
      %p112 = scmp.ne.s32.totalorder %s97, %s111
      %p113 = scmp.eq.s32.totalorder %s31, 0
      %p114 = por %p112, %p113
      %s116 = sadd.s32 %s115, 1
      %p119 = scmp.eq.s32.totalorder %s25, 1
      %p120 = scmp.ne.s32.totalorder %s115, %s117
      %p121 = scmp.eq.s32.totalorder %s25, 0
      %p122 = por %p120, %p121
      %p123 = scmp.ne.s32.totalorder %s115, %s117
      %p124 = scmp.eq.s32.totalorder %s30, 1
      %p125 = por %p123, %p124
      %p126 = scmp.ne.s32.totalorder %s117, %s118
      %p127 = scmp.eq.s32.totalorder %s30, 0
      %p128 = por %p126, %p127
      %p129 = scmp.ne.s32.totalorder %s117, %s118
      %p130 = scmp.eq.s32.totalorder %s31, 1
      %p131 = por %p129, %p130
      %p133 = scmp.ne.s32.totalorder %s118, %s132
      %p134 = scmp.eq.s32.totalorder %s31, 0
      %p135 = por %p133, %p134
      %s137 = sadd.s32 %s136, 1
      %p140 = scmp.eq.s32.totalorder %s25, 1
      %p141 = scmp.ne.s32.totalorder %s136, %s138
      %p142 = scmp.eq.s32.totalorder %s25, 0
      %p143 = por %p141, %p142
      %p144 = scmp.ne.s32.totalorder %s136, %s138
      %p145 = scmp.eq.s32.totalorder %s30, 1
      %p146 = por %p144, %p145
      %p147 = scmp.ne.s32.totalorder %s138, %s139
      %p148 = scmp.eq.s32.totalorder %s30, 0
      %p149 = por %p147, %p148
      %p150 = scmp.ne.s32.totalorder %s138, %s139
      %p151 = scmp.eq.s32.totalorder %s31, 1
      %p152 = por %p150, %p151
      %p154 = scmp.ne.s32.totalorder %s139, %s153
      %p155 = scmp.eq.s32.totalorder %s31, 0
      %p156 = por %p154, %p155
      %s157 = ssub.s32 %s32, %s44
      %s158 = ssub.s32 %s33, %s40
      %s159 = sor.u32 %s157, %s158
      %p160 = scmp.eq.s32.totalorder %s159, 0
      %s162 = sadd.s32 %s161, 1
      %s163 = scalar_select %p160, %s161, %s162
      %p166 = pneg %p160
      %p167 = scmp.eq.s32.totalorder %s25, 1
      %p168 = por %p166, %p167
      %p169 = scmp.ne.s32.totalorder %s161, %s164
      %p170 = scmp.eq.s32.totalorder %s25, 0
      %p171 = por %p169, %p170
      %p172 = scmp.ne.s32.totalorder %s161, %s164
      %p173 = scmp.eq.s32.totalorder %s30, 1
      %p174 = por %p172, %p173
      %p175 = scmp.ne.s32.totalorder %s164, %s165
      %p176 = scmp.eq.s32.totalorder %s30, 0
      %p177 = por %p175, %p176
      %p178 = scmp.ne.s32.totalorder %s164, %s165
      %p179 = scmp.eq.s32.totalorder %s31, 1
      %p180 = por %p178, %p179
      %p182 = scmp.ne.s32.totalorder %s165, %s181
      %p183 = scmp.eq.s32.totalorder %s31, 0
      %p184 = por %p182, %p183
      %s185 = ssub.s32 %s32, %s44
      %s186 = ssub.s32 %s33, %s40
      %s187 = sor.u32 %s185, %s186
      %p188 = scmp.eq.s32.totalorder %s187, 0
      %s190 = sadd.s32 %s189, 1
      %s191 = scalar_select %p188, %s189, %s190
      %p194 = pneg %p188
      %p195 = scmp.eq.s32.totalorder %s25, 1
      %p196 = por %p194, %p195
      %p197 = scmp.ne.s32.totalorder %s189, %s192
      %p198 = scmp.eq.s32.totalorder %s25, 0
      %p199 = por %p197, %p198
      %p200 = scmp.ne.s32.totalorder %s189, %s192
      %p201 = scmp.eq.s32.totalorder %s30, 1
      %p202 = por %p200, %p201
      %p203 = scmp.ne.s32.totalorder %s192, %s193
      %p204 = scmp.eq.s32.totalorder %s30, 0
      %p205 = por %p203, %p204
      %p206 = scmp.ne.s32.totalorder %s192, %s193
      %p207 = scmp.eq.s32.totalorder %s31, 1
      %p208 = por %p206, %p207
      %p210 = scmp.ne.s32.totalorder %s193, %s209
      %p211 = scmp.eq.s32.totalorder %s31, 0
      %p212 = por %p210, %p211
      %s213 = ssub.s32 %s32, %s44
      %s214 = ssub.s32 %s33, %s40
      %s215 = sor.u32 %s213, %s214
      %p216 = scmp.eq.s32.totalorder %s215, 0
      %s218 = sadd.s32 %s217, 1
      %s219 = scalar_select %p216, %s217, %s218
      %p222 = pneg %p216
      %p223 = scmp.eq.s32.totalorder %s25, 1
      %p224 = por %p222, %p223
      %p225 = scmp.ne.s32.totalorder %s217, %s220
      %p226 = scmp.eq.s32.totalorder %s25, 0
      %p227 = por %p225, %p226
      %p228 = scmp.ne.s32.totalorder %s217, %s220
      %p229 = scmp.eq.s32.totalorder %s30, 1
      %p230 = por %p228, %p229
      %p231 = scmp.ne.s32.totalorder %s220, %s221
      %p232 = scmp.eq.s32.totalorder %s30, 0
      %p233 = por %p231, %p232
      %p234 = scmp.ne.s32.totalorder %s220, %s221
      %p235 = scmp.eq.s32.totalorder %s31, 1
      %p236 = por %p234, %p235
      %p238 = scmp.ne.s32.totalorder %s221, %s237
      %p239 = scmp.eq.s32.totalorder %s31, 0
      %p240 = por %p238, %p239
      %p241 = scmp.le.s32.totalorder 1, %s25
      %p242 = scmp.lt.s32.totalorder %s25, 3
      %p243 = pnand %p241, %p242
      %p244 = pneg %p243
      // Predicated region
      $region9: #{tpu_custom_call.1} parent=5 // pred_check
        _
      $region10: #{tpu_custom_call.1} parent=5 // pred_check_branch
        %246 = sbr.rel (%p243) target = $region12
      $region11: #{tpu_custom_call.1} parent=5 // pred_region
        %s247 = ssub.s32 %s25, 1
        // Predicated region
        $region13: #{tpu_custom_call.1} parent=11 // pred_check
          %p248 = pneg %p86
        $region14: #{tpu_custom_call.1} parent=11 // pred_check_branch
          %250 = sbr.rel (%p248) target = $region16
        $region15: #{tpu_custom_call.1} parent=11 // pred_region
          %s252 = ssub.s32 32, 32
          %253 = vsyncadd [#allocation6], %s252
          %s255 = sshll.u32 [#allocation5], 4
          %s256 = int_to_ptr.vmem [resolvable:$true] %s255
          %258 = dma.hbm_to_vmem [thread:$0]  %s1, 32, %s256, [#allocation6]
        $region16: #{tpu_custom_call.1} parent=11 // pred_fallthru
          _
        // Predicated region
        $region17: #{tpu_custom_call.1} parent=11 // pred_check
          %p259 = pneg %p107
        $region18: #{tpu_custom_call.1} parent=11 // pred_check_branch
          %261 = sbr.rel (%p259) target = $region20
        $region19: #{tpu_custom_call.1} parent=11 // pred_region
          %s263 = ssub.s32 32, 32
          %264 = vsyncadd [#allocation6], %s263
          %s266 = sshll.u32 [#allocation7], 4
          %s267 = int_to_ptr.vmem [resolvable:$true] %s266
          %269 = dma.hbm_to_vmem [thread:$0]  %s2, 32, %s267, [#allocation6]
        $region20: #{tpu_custom_call.1} parent=11 // pred_fallthru
          _
        // Predicated region
        $region21: #{tpu_custom_call.1} parent=11 // pred_check
          %p270 = pneg %p128
        $region22: #{tpu_custom_call.1} parent=11 // pred_check_branch
          %272 = sbr.rel (%p270) target = $region24
        $region23: #{tpu_custom_call.1} parent=11 // pred_region
          %s274 = ssub.s32 12288, 12288
          %275 = vsyncadd [#allocation9], %s274
          %s276 = sshll.u32 [#allocation8], 4
          %s277 = int_to_ptr.vmem [resolvable:$true] %s276
          %282 = dma.hbm_to_vmem [thread:$0]  %s3, 12288, %s277, [#allocation9], 384, 384, 24
        $region24: #{tpu_custom_call.1} parent=11 // pred_fallthru
          _
        // Predicated region
        $region25: #{tpu_custom_call.1} parent=11 // pred_check
          %p283 = pneg %p149
        $region26: #{tpu_custom_call.1} parent=11 // pred_check_branch
          %285 = sbr.rel (%p283) target = $region28
        $region27: #{tpu_custom_call.1} parent=11 // pred_region
          _
        $region28: #{tpu_custom_call.1} parent=11 // pred_fallthru
          _
      $region12: #{tpu_custom_call.1} parent=5 // pred_fallthru
        _
      %p286 = scmp.lt.s32.totalorder %s25, 2
      // Predicated region
      $region29: #{tpu_custom_call.1} parent=5 // pred_check
        %p287 = pneg %p286
      $region30: #{tpu_custom_call.1} parent=5 // pred_check_branch
        %289 = sbr.rel (%p287) target = $region32
      $region31: #{tpu_custom_call.1} parent=5 // pred_region
        // Predicated region
        $region33: #{tpu_custom_call.1} parent=31 // pred_check
          %p290 = pneg %p59
        $region34: #{tpu_custom_call.1} parent=31 // pred_check_branch
          %292 = sbr.rel (%p290) target = $region36
        $region35: #{tpu_custom_call.1} parent=31 // pred_region
          %s293 = sand.u32 %s49, 1
          %s294 = scalar_lea.sflag [#allocation3], %s293
          %s295 = sand.u32 %s49, 1
          %s296 = smul.addr %s295, 32
          %s297 = scalar_lea.vmem [#allocation2], %s296
          %s298 = smul.u32 2, %s33
          %s300 = ssub.s32 512, 512
          %301 = vsyncadd %s294, %s300
          %s302 = smul.addr %s298, 2
          %s303 = smul.addr %s32, 4
          %s304 = sadd.s32 %s302, %s303
          %s305 = smul.addr %s304, 128
          %s306 = scalar_lea.hbm %s0, %s305
          %s307 = sshll.u32 %s297, 4
          %s308 = int_to_ptr.vmem [resolvable:$true] %s307
          %313 = dma.hbm_to_vmem [thread:$0]  %s306, 512, %s308, %s294, 256, 256, 16
        $region36: #{tpu_custom_call.1} parent=31 // pred_fallthru
          _
      $region32: #{tpu_custom_call.1} parent=5 // pred_fallthru
        _
      %p314 = scmp.le.s32.totalorder 1, %s25
      %p315 = scmp.lt.s32.totalorder %s25, 3
      %p316 = pnand %p314, %p315
      %p317 = pneg %p316
      // Predicated region
      $region37: #{tpu_custom_call.1} parent=5 // pred_check
        _
      $region38: #{tpu_custom_call.1} parent=5 // pred_check_branch
        %319 = sbr.rel (%p316) target = $region40
      $region39: #{tpu_custom_call.1} parent=5 // pred_region
        %s320 = ssub.s32 %s25, 1
        %s321 = sand.u32 %s52, 1
        %s322 = scalar_lea.sflag [#allocation3], %s321
        %s323 = sand.u32 %s52, 1
        %s324 = smul.addr %s323, 32
        %s325 = scalar_lea.vmem [#allocation2], %s324
        // Predicated region
        $region41: #{tpu_custom_call.1} parent=39 // pred_check
          %p326 = pneg %p65
        $region42: #{tpu_custom_call.1} parent=39 // pred_check_branch
          %328 = sbr.rel (%p326) target = $region44
        $region43: #{tpu_custom_call.1} parent=39 // pred_region
          %329 = dma.done %s322, 512
        $region44: #{tpu_custom_call.1} parent=39 // pred_fallthru
          _
        // Predicated region
        $region45: #{tpu_custom_call.1} parent=39 // pred_check
          %p330 = pneg %p86
        $region46: #{tpu_custom_call.1} parent=39 // pred_check_branch
          %332 = sbr.rel (%p330) target = $region48
        $region47: #{tpu_custom_call.1} parent=39 // pred_region
          %333 = dma.done [#allocation6], 32
        $region48: #{tpu_custom_call.1} parent=39 // pred_fallthru
          _
        // Predicated region
        $region49: #{tpu_custom_call.1} parent=39 // pred_check
          %p334 = pneg %p107
        $region50: #{tpu_custom_call.1} parent=39 // pred_check_branch
          %336 = sbr.rel (%p334) target = $region52
        $region51: #{tpu_custom_call.1} parent=39 // pred_region
          %337 = dma.done [#allocation6], 32
        $region52: #{tpu_custom_call.1} parent=39 // pred_fallthru
          _
        // Predicated region
        $region53: #{tpu_custom_call.1} parent=39 // pred_check
          %p338 = pneg %p128
        $region54: #{tpu_custom_call.1} parent=39 // pred_check_branch
          %340 = sbr.rel (%p338) target = $region56
        $region55: #{tpu_custom_call.1} parent=39 // pred_region
          %341 = dma.done [#allocation9], 12288
        $region56: #{tpu_custom_call.1} parent=39 // pred_fallthru
          _
        %s342 = sand.u32 %s52, 1
        %s343 = scalar_lea.sflag [#allocation3], %s342
        %s344 = sand.u32 %s52, 1
        %s345 = smul.addr %s344, 32
        %s346 = scalar_lea.vmem [#allocation2], %s345
        %p347 = pneg %p65
        %p348 = pneg %p62
        %p349 = pneg %p86
        %p350 = pneg %p83
        %p351 = pneg %p107
        %p352 = pneg %p104
        %p353 = pneg %p128
        %p354 = pneg %p125
        %p355 = pneg %p149
        %p356 = pneg %p146
        %p357 = pneg %p177
        %p358 = pneg %p174
        %s359 = sand.u32 %s164, 1
        %s360 = scalar_lea.sflag [#allocation4], %s359
        %s361 = sand.u32 %s164, 1
        %s362 = smul.addr %s361, 16
        %s363 = scalar_lea.vmem [#allocation10], %s362
        %p364 = pneg %p205
        %p365 = pneg %p202
        %s366 = sand.u32 %s30, 1
        %s367 = scalar_lea.sflag [#allocation12], %s366
        %s368 = sand.u32 %s192, 1
        %s369 = smul.addr %s368, 16
        %s370 = scalar_lea.vmem [#allocation11], %s369
        %p371 = pneg %p233
        %p372 = pneg %p230
        %s373 = sand.u32 %s30, 1
        %s374 = scalar_lea.sflag [#allocation12], %s373
        %s375 = sand.u32 %s220, 1
        %s376 = smul.addr %s375, 16
        %s377 = scalar_lea.vmem [#allocation13], %s376
        %s378 = smul.u32 2, %s35
        %s379 = smul.u32 2, %s35
        %s380 = smul.u32 2, %s35
        %s381 = smul.u32 2, %s35
        %v382 = vld [vmem:[%s325] sm:$0xff]
        %v383 = vld [vmem:[%s325 + $0x8] sm:$0xff]
        %v384 = vld [vmem:[%s325 + $0x10] sm:$0xff]
        %v385 = vld [vmem:[%s325 + $0x18] sm:$0xff]
        %v386 = vld [vmem:[#allocation5] sm:$0x3]
        %v387 = vld [vmem:[#allocation7] sm:$0x3]
        %v388 = vadd.f32 %v382, %v383
        %389 = vadd.xlane.f32.xlu0 %v388
        %v390 = vpop.xlane.xlu0 %389
        %v391 = vadd.f32 %v384, %v385
        %392 = vadd.xlane.f32.xlu0 %v391
        %v393 = vpop.xlane.xlu0 %392
        %v394 = vrcp.pop 256.0
        %v395 = vmul.f32 %v390, %v394
        %v396 = vmul.f32 %v393, %v394
        %v397 = vsub.f32 %v382, %v395
        %v398 = vsub.f32 %v383, %v395
        %v399 = vsub.f32 %v384, %v396
        %v400 = vsub.f32 %v385, %v396
        %v401 = vmul.f32 %v397, %v397
        %v402 = vmul.f32 %v398, %v398
        %v403 = vmul.f32 %v399, %v399
        %v404 = vmul.f32 %v400, %v400
        %v405 = vadd.f32 %v401, %v402
        %406 = vadd.xlane.f32.xlu0 %v405
        %v407 = vpop.xlane.xlu0 %406
        %v408 = vadd.f32 %v403, %v404
        %409 = vadd.xlane.f32.xlu0 %v408
        %v410 = vpop.xlane.xlu0 %409
        %v411 = vmul.f32 %v407, %v394
        %v412 = vmul.f32 %v410, %v394
        %v413 = vadd.f32 %v411, 1e-06
        %v414 = vadd.f32 %v412, 1e-06
        %v415 = vrsqrt.pop %v413
        %v416 = vrsqrt.pop %v414
        %v417 = vmul.f32 %v397, %v415
        %v418 = vmul.f32 %v398, %v415
        %v419 = vmul.f32 %v399, %v416
        %v420 = vmul.f32 %v400, %v416
        %v422 = vlaneseq
        %v423 = vshrl.u32 %v422, 7
        %v424 = vsub.s32 0, %v423
        %v425 = vrot.slane %v386, %v424
        %v426 = vlaneseq
        %v427 = vshrl.u32 %v426, 7
        %v428 = vsub.s32 1, %v427
        %v429 = vrot.slane %v386, %v428
        %v432 = vmul.f32 %v417, %v425
        %v433 = vmul.f32 %v418, %v429
        %v434 = vmul.f32 %v419, %v425
        %v435 = vmul.f32 %v420, %v429
        %v437 = vlaneseq
        %v438 = vshrl.u32 %v437, 7
        %v439 = vsub.s32 0, %v438
        %v440 = vrot.slane %v387, %v439
        %v441 = vlaneseq
        %v442 = vshrl.u32 %v441, 7
        %v443 = vsub.s32 1, %v442
        %v444 = vrot.slane %v387, %v443
        %v447 = vadd.f32 %v432, %v440
        %v448 = vadd.f32 %v433, %v444
        %v449 = vadd.f32 %v434, %v440
        %v450 = vadd.f32 %v435, %v444
        %v451 = vpack.c.bf16 %v449, %v447
        %v452 = vpack.c.bf16 %v450, %v448
        %v453 = vld [vmem:[#allocation8] sm:$0xff]
        %v454 = vld [vmem:[#allocation8 + $0x8] sm:$0xff]
        %v455 = vld [vmem:[#allocation8 + $0x10] sm:$0xff]
        %v456 = vld [vmem:[#allocation8 + $0x18] sm:$0xff]
        %v457 = vld [vmem:[#allocation8 + $0x20] sm:$0xff]
        %v458 = vld [vmem:[#allocation8 + $0x28] sm:$0xff]
        %v459 = vld [vmem:[#allocation8 + $0x30] sm:$0xff]
        %v460 = vld [vmem:[#allocation8 + $0x38] sm:$0xff]
        %v461 = vld [vmem:[#allocation8 + $0x40] sm:$0xff]
        %v462 = vld [vmem:[#allocation8 + $0x48] sm:$0xff]
        %v463 = vld [vmem:[#allocation8 + $0x50] sm:$0xff]
        %v464 = vld [vmem:[#allocation8 + $0x58] sm:$0xff]
        %v465 = vld [vmem:[#allocation8 + $0x60] sm:$0xff]
        %v466 = vld [vmem:[#allocation8 + $0x68] sm:$0xff]
        %v467 = vld [vmem:[#allocation8 + $0x70] sm:$0xff]
        %v468 = vld [vmem:[#allocation8 + $0x78] sm:$0xff]
        %v469 = vld [vmem:[#allocation8 + $0x80] sm:$0xff]
        %v470 = vld [vmem:[#allocation8 + $0x88] sm:$0xff]
        %v471 = vld [vmem:[#allocation8 + $0x90] sm:$0xff]
        %v472 = vld [vmem:[#allocation8 + $0x98] sm:$0xff]
        %v473 = vld [vmem:[#allocation8 + $0xa0] sm:$0xff]
        %v474 = vld [vmem:[#allocation8 + $0xa8] sm:$0xff]
        %v475 = vld [vmem:[#allocation8 + $0xb0] sm:$0xff]
        %v476 = vld [vmem:[#allocation8 + $0xb8] sm:$0xff]
        %v477 = vld [vmem:[#allocation8 + $0xc0] sm:$0xff]
        %v478 = vld [vmem:[#allocation8 + $0xc8] sm:$0xff]
        %v479 = vld [vmem:[#allocation8 + $0xd0] sm:$0xff]
        %v480 = vld [vmem:[#allocation8 + $0xd8] sm:$0xff]
        %v481 = vld [vmem:[#allocation8 + $0xe0] sm:$0xff]
        %v482 = vld [vmem:[#allocation8 + $0xe8] sm:$0xff]
        %v483 = vld [vmem:[#allocation8 + $0xf0] sm:$0xff]
        %v484 = vld [vmem:[#allocation8 + $0xf8] sm:$0xff]
        %v485 = vld [vmem:[#allocation8 + $0x100] sm:$0xff]
        %v486 = vld [vmem:[#allocation8 + $0x108] sm:$0xff]
        %v487 = vld [vmem:[#allocation8 + $0x110] sm:$0xff]
        %v488 = vld [vmem:[#allocation8 + $0x118] sm:$0xff]
        %v489 = vld [vmem:[#allocation8 + $0x120] sm:$0xff]
        %v490 = vld [vmem:[#allocation8 + $0x128] sm:$0xff]
        %v491 = vld [vmem:[#allocation8 + $0x130] sm:$0xff]
        %v492 = vld [vmem:[#allocation8 + $0x138] sm:$0xff]
        %v493 = vld [vmem:[#allocation8 + $0x140] sm:$0xff]
        %v494 = vld [vmem:[#allocation8 + $0x148] sm:$0xff]
        %v495 = vld [vmem:[#allocation8 + $0x150] sm:$0xff]
        %v496 = vld [vmem:[#allocation8 + $0x158] sm:$0xff]
        %v497 = vld [vmem:[#allocation8 + $0x160] sm:$0xff]
        %v498 = vld [vmem:[#allocation8 + $0x168] sm:$0xff]
        %v499 = vld [vmem:[#allocation8 + $0x170] sm:$0xff]
        %v500 = vld [vmem:[#allocation8 + $0x178] sm:$0xff]
        %v501 = vld [vmem:[#allocation8 + $0x180] sm:$0xff]
        %v502 = vld [vmem:[#allocation8 + $0x188] sm:$0xff]
        %v503 = vld [vmem:[#allocation8 + $0x190] sm:$0xff]
        %v504 = vld [vmem:[#allocation8 + $0x198] sm:$0xff]
        %v505 = vld [vmem:[#allocation8 + $0x1a0] sm:$0xff]
        %v506 = vld [vmem:[#allocation8 + $0x1a8] sm:$0xff]
        %v507 = vld [vmem:[#allocation8 + $0x1b0] sm:$0xff]
        %v508 = vld [vmem:[#allocation8 + $0x1b8] sm:$0xff]
        %v509 = vld [vmem:[#allocation8 + $0x1c0] sm:$0xff]
        %v510 = vld [vmem:[#allocation8 + $0x1c8] sm:$0xff]
        %v511 = vld [vmem:[#allocation8 + $0x1d0] sm:$0xff]
        %v512 = vld [vmem:[#allocation8 + $0x1d8] sm:$0xff]
        %v513 = vld [vmem:[#allocation8 + $0x1e0] sm:$0xff]
        %v514 = vld [vmem:[#allocation8 + $0x1e8] sm:$0xff]
        %v515 = vld [vmem:[#allocation8 + $0x1f0] sm:$0xff]
        %v516 = vld [vmem:[#allocation8 + $0x1f8] sm:$0xff]
        %v517 = vld [vmem:[#allocation8 + $0x200] sm:$0xff]
        %v518 = vld [vmem:[#allocation8 + $0x208] sm:$0xff]
        %v519 = vld [vmem:[#allocation8 + $0x210] sm:$0xff]
        %v520 = vld [vmem:[#allocation8 + $0x218] sm:$0xff]
        %v521 = vld [vmem:[#allocation8 + $0x220] sm:$0xff]
        %v522 = vld [vmem:[#allocation8 + $0x228] sm:$0xff]
        %v523 = vld [vmem:[#allocation8 + $0x230] sm:$0xff]
        %v524 = vld [vmem:[#allocation8 + $0x238] sm:$0xff]
        %v525 = vld [vmem:[#allocation8 + $0x240] sm:$0xff]
        %v526 = vld [vmem:[#allocation8 + $0x248] sm:$0xff]
        %v527 = vld [vmem:[#allocation8 + $0x250] sm:$0xff]
        %v528 = vld [vmem:[#allocation8 + $0x258] sm:$0xff]
        %v529 = vld [vmem:[#allocation8 + $0x260] sm:$0xff]
        %v530 = vld [vmem:[#allocation8 + $0x268] sm:$0xff]
        %v531 = vld [vmem:[#allocation8 + $0x270] sm:$0xff]
        %v532 = vld [vmem:[#allocation8 + $0x278] sm:$0xff]
        %v533 = vld [vmem:[#allocation8 + $0x280] sm:$0xff]
        %v534 = vld [vmem:[#allocation8 + $0x288] sm:$0xff]
        %v535 = vld [vmem:[#allocation8 + $0x290] sm:$0xff]
        %v536 = vld [vmem:[#allocation8 + $0x298] sm:$0xff]
        %v537 = vld [vmem:[#allocation8 + $0x2a0] sm:$0xff]
        %v538 = vld [vmem:[#allocation8 + $0x2a8] sm:$0xff]
        %v539 = vld [vmem:[#allocation8 + $0x2b0] sm:$0xff]
        %v540 = vld [vmem:[#allocation8 + $0x2b8] sm:$0xff]
        %v541 = vld [vmem:[#allocation8 + $0x2c0] sm:$0xff]
        %v542 = vld [vmem:[#allocation8 + $0x2c8] sm:$0xff]
        %v543 = vld [vmem:[#allocation8 + $0x2d0] sm:$0xff]
        %v544 = vld [vmem:[#allocation8 + $0x2d8] sm:$0xff]
        %v545 = vld [vmem:[#allocation8 + $0x2e0] sm:$0xff]
        %v546 = vld [vmem:[#allocation8 + $0x2e8] sm:$0xff]
        %v547 = vld [vmem:[#allocation8 + $0x2f0] sm:$0xff]
        %v548 = vld [vmem:[#allocation8 + $0x2f8] sm:$0xff]
        %v549 = vld [vmem:[%s4] sm:$0x3f]
        %v551 = vlaneseq
        %v552 = vshrl.u32 %v551, 7
        %v553 = vsub.s32 0, %v552
        %v554 = vrot.slane %v549, %v553
        %v555 = vlaneseq
        %v556 = vshrl.u32 %v555, 7
        %v557 = vsub.s32 1, %v556
        %v558 = vrot.slane %v549, %v557
        %v559 = vlaneseq
        %v560 = vshrl.u32 %v559, 7
        %v561 = vsub.s32 2, %v560
        %v562 = vrot.slane %v549, %v561
        %v563 = vlaneseq
        %v564 = vshrl.u32 %v563, 7
        %v565 = vsub.s32 3, %v564
        %v566 = vrot.slane %v549, %v565
        %v567 = vlaneseq
        %v568 = vshrl.u32 %v567, 7
        %v569 = vsub.s32 4, %v568
        %v570 = vrot.slane %v549, %v569
        %v571 = vlaneseq
        %v572 = vshrl.u32 %v571, 7
        %v573 = vsub.s32 5, %v572
        %v574 = vrot.slane %v549, %v573
        %v677 = vunpack.c.l.b16 %v453
        %v678 = vunpack.c.h.b16 %v453
        %v679 = vunpack.c.l.b16 %v454
        %v680 = vunpack.c.h.b16 %v454
        %v681 = vunpack.c.l.b16 %v455
        %v682 = vunpack.c.h.b16 %v455
        %v683 = vunpack.c.l.b16 %v456
        %v684 = vunpack.c.h.b16 %v456
        %v685 = vunpack.c.l.b16 %v457
        %v686 = vunpack.c.h.b16 %v457
        %v687 = vunpack.c.l.b16 %v458
        %v688 = vunpack.c.h.b16 %v458
        %v689 = vunpack.c.l.b16 %v459
        %v690 = vunpack.c.h.b16 %v459
        %v691 = vunpack.c.l.b16 %v460
        %v692 = vunpack.c.h.b16 %v460
        %v693 = vunpack.c.l.b16 %v461
        %v694 = vunpack.c.h.b16 %v461
        %v695 = vunpack.c.l.b16 %v462
        %v696 = vunpack.c.h.b16 %v462
        %v697 = vunpack.c.l.b16 %v463
        %v698 = vunpack.c.h.b16 %v463
        %v699 = vunpack.c.l.b16 %v464
        %v700 = vunpack.c.h.b16 %v464
        %v701 = vunpack.c.l.b16 %v465
        %v702 = vunpack.c.h.b16 %v465
        %v703 = vunpack.c.l.b16 %v466
        %v704 = vunpack.c.h.b16 %v466
        %v705 = vunpack.c.l.b16 %v467
        %v706 = vunpack.c.h.b16 %v467
        %v707 = vunpack.c.l.b16 %v468
        %v708 = vunpack.c.h.b16 %v468
        %v709 = vunpack.c.l.b16 %v469
        %v710 = vunpack.c.h.b16 %v469
        %v711 = vunpack.c.l.b16 %v470
        %v712 = vunpack.c.h.b16 %v470
        %v713 = vunpack.c.l.b16 %v471
        %v714 = vunpack.c.h.b16 %v471
        %v715 = vunpack.c.l.b16 %v472
        %v716 = vunpack.c.h.b16 %v472
        %v717 = vunpack.c.l.b16 %v473
        %v718 = vunpack.c.h.b16 %v473
        %v719 = vunpack.c.l.b16 %v474
        %v720 = vunpack.c.h.b16 %v474
        %v721 = vunpack.c.l.b16 %v475
        %v722 = vunpack.c.h.b16 %v475
        %v723 = vunpack.c.l.b16 %v476
        %v724 = vunpack.c.h.b16 %v476
        %v725 = vunpack.c.l.b16 %v477
        %v726 = vunpack.c.h.b16 %v477
        %v727 = vunpack.c.l.b16 %v478
        %v728 = vunpack.c.h.b16 %v478
        %v729 = vunpack.c.l.b16 %v479
        %v730 = vunpack.c.h.b16 %v479
        %v731 = vunpack.c.l.b16 %v480
        %v732 = vunpack.c.h.b16 %v480
        %v733 = vunpack.c.l.b16 %v481
        %v734 = vunpack.c.h.b16 %v481
        %v735 = vunpack.c.l.b16 %v482
        %v736 = vunpack.c.h.b16 %v482
        %v737 = vunpack.c.l.b16 %v483
        %v738 = vunpack.c.h.b16 %v483
        %v739 = vunpack.c.l.b16 %v484
        %v740 = vunpack.c.h.b16 %v484
        %v741 = vunpack.c.l.b16 %v485
        %v742 = vunpack.c.h.b16 %v485
        %v743 = vunpack.c.l.b16 %v486
        %v744 = vunpack.c.h.b16 %v486
        %v745 = vunpack.c.l.b16 %v487
        %v746 = vunpack.c.h.b16 %v487
        %v747 = vunpack.c.l.b16 %v488
        %v748 = vunpack.c.h.b16 %v488
        %v749 = vunpack.c.l.b16 %v489
        %v750 = vunpack.c.h.b16 %v489
        %v751 = vunpack.c.l.b16 %v490
        %v752 = vunpack.c.h.b16 %v490
        %v753 = vunpack.c.l.b16 %v491
        %v754 = vunpack.c.h.b16 %v491
        %v755 = vunpack.c.l.b16 %v492
        %v756 = vunpack.c.h.b16 %v492
        %v757 = vunpack.c.l.b16 %v493
        %v758 = vunpack.c.h.b16 %v493
        %v759 = vunpack.c.l.b16 %v494
        %v760 = vunpack.c.h.b16 %v494
        %v761 = vunpack.c.l.b16 %v495
        %v762 = vunpack.c.h.b16 %v495
        %v763 = vunpack.c.l.b16 %v496
        %v764 = vunpack.c.h.b16 %v496
        %v765 = vunpack.c.l.b16 %v497
        %v766 = vunpack.c.h.b16 %v497
        %v767 = vunpack.c.l.b16 %v498
        %v768 = vunpack.c.h.b16 %v498
        %v769 = vunpack.c.l.b16 %v499
        %v770 = vunpack.c.h.b16 %v499
        %v771 = vunpack.c.l.b16 %v500
        %v772 = vunpack.c.h.b16 %v500
        %v773 = vunpack.c.l.b16 %v501
        %v774 = vunpack.c.h.b16 %v501
        %v775 = vunpack.c.l.b16 %v502
        %v776 = vunpack.c.h.b16 %v502
        %v777 = vunpack.c.l.b16 %v503
        %v778 = vunpack.c.h.b16 %v503
        %v779 = vunpack.c.l.b16 %v504
        %v780 = vunpack.c.h.b16 %v504
        %v781 = vunpack.c.l.b16 %v505
        %v782 = vunpack.c.h.b16 %v505
        %v783 = vunpack.c.l.b16 %v506
        %v784 = vunpack.c.h.b16 %v506
        %v785 = vunpack.c.l.b16 %v507
        %v786 = vunpack.c.h.b16 %v507
        %v787 = vunpack.c.l.b16 %v508
        %v788 = vunpack.c.h.b16 %v508
        %v789 = vunpack.c.l.b16 %v509
        %v790 = vunpack.c.h.b16 %v509
        %v791 = vunpack.c.l.b16 %v510
        %v792 = vunpack.c.h.b16 %v510
        %v793 = vunpack.c.l.b16 %v511
        %v794 = vunpack.c.h.b16 %v511
        %v795 = vunpack.c.l.b16 %v512
        %v796 = vunpack.c.h.b16 %v512
        %v797 = vunpack.c.l.b16 %v513
        %v798 = vunpack.c.h.b16 %v513
        %v799 = vunpack.c.l.b16 %v514
        %v800 = vunpack.c.h.b16 %v514
        %v801 = vunpack.c.l.b16 %v515
        %v802 = vunpack.c.h.b16 %v515
        %v803 = vunpack.c.l.b16 %v516
        %v804 = vunpack.c.h.b16 %v516
        %v805 = vunpack.c.l.b16 %v517
        %v806 = vunpack.c.h.b16 %v517
        %v807 = vunpack.c.l.b16 %v518
        %v808 = vunpack.c.h.b16 %v518
        %v809 = vunpack.c.l.b16 %v519
        %v810 = vunpack.c.h.b16 %v519
        %v811 = vunpack.c.l.b16 %v520
        %v812 = vunpack.c.h.b16 %v520
        %v813 = vunpack.c.l.b16 %v521
        %v814 = vunpack.c.h.b16 %v521
        %v815 = vunpack.c.l.b16 %v522
        %v816 = vunpack.c.h.b16 %v522
        %v817 = vunpack.c.l.b16 %v523
        %v818 = vunpack.c.h.b16 %v523
        %v819 = vunpack.c.l.b16 %v524
        %v820 = vunpack.c.h.b16 %v524
        %v821 = vunpack.c.l.b16 %v525
        %v822 = vunpack.c.h.b16 %v525
        %v823 = vunpack.c.l.b16 %v526
        %v824 = vunpack.c.h.b16 %v526
        %v825 = vunpack.c.l.b16 %v527
        %v826 = vunpack.c.h.b16 %v527
        %v827 = vunpack.c.l.b16 %v528
        %v828 = vunpack.c.h.b16 %v528
        %v829 = vunpack.c.l.b16 %v529
        %v830 = vunpack.c.h.b16 %v529
        %v831 = vunpack.c.l.b16 %v530
        %v832 = vunpack.c.h.b16 %v530
        %v833 = vunpack.c.l.b16 %v531
        %v834 = vunpack.c.h.b16 %v531
        %v835 = vunpack.c.l.b16 %v532
        %v836 = vunpack.c.h.b16 %v532
        %v837 = vunpack.c.l.b16 %v533
        %v838 = vunpack.c.h.b16 %v533
        %v839 = vunpack.c.l.b16 %v534
        %v840 = vunpack.c.h.b16 %v534
        %v841 = vunpack.c.l.b16 %v535
        %v842 = vunpack.c.h.b16 %v535
        %v843 = vunpack.c.l.b16 %v536
        %v844 = vunpack.c.h.b16 %v536
        %v845 = vunpack.c.l.b16 %v537
        %v846 = vunpack.c.h.b16 %v537
        %v847 = vunpack.c.l.b16 %v538
        %v848 = vunpack.c.h.b16 %v538
        %v849 = vunpack.c.l.b16 %v539
        %v850 = vunpack.c.h.b16 %v539
        %v851 = vunpack.c.l.b16 %v540
        %v852 = vunpack.c.h.b16 %v540
        %v853 = vunpack.c.l.b16 %v541
        %v854 = vunpack.c.h.b16 %v541
        %v855 = vunpack.c.l.b16 %v542
        %v856 = vunpack.c.h.b16 %v542
        %v857 = vunpack.c.l.b16 %v543
        %v858 = vunpack.c.h.b16 %v543
        %v859 = vunpack.c.l.b16 %v544
        %v860 = vunpack.c.h.b16 %v544
        %v861 = vunpack.c.l.b16 %v545
        %v862 = vunpack.c.h.b16 %v545
        %v863 = vunpack.c.l.b16 %v546
        %v864 = vunpack.c.h.b16 %v546
        %v865 = vunpack.c.l.b16 %v547
        %v866 = vunpack.c.h.b16 %v547
        %v867 = vunpack.c.l.b16 %v548
        %v868 = vunpack.c.h.b16 %v548
        %v869 = vpack.c.b16 %v683, %v677
        %v870 = vpack.c.b16 %v684, %v678
        %v871 = vpack.c.b16 %v685, %v679
        %v872 = vpack.c.b16 %v686, %v680
        %v873 = vpack.c.b16 %v687, %v681
        %v874 = vpack.c.b16 %v688, %v682
        %v875 = vpack.c.b16 %v695, %v689
        %v876 = vpack.c.b16 %v696, %v690
        %v877 = vpack.c.b16 %v697, %v691
        %v878 = vpack.c.b16 %v698, %v692
        %v879 = vpack.c.b16 %v699, %v693
        %v880 = vpack.c.b16 %v700, %v694
        %v881 = vpack.c.b16 %v707, %v701
        %v882 = vpack.c.b16 %v708, %v702
        %v883 = vpack.c.b16 %v709, %v703
        %v884 = vpack.c.b16 %v710, %v704
        %v885 = vpack.c.b16 %v711, %v705
        %v886 = vpack.c.b16 %v712, %v706
        %v887 = vpack.c.b16 %v719, %v713
        %v888 = vpack.c.b16 %v720, %v714
        %v889 = vpack.c.b16 %v721, %v715
        %v890 = vpack.c.b16 %v722, %v716
        %v891 = vpack.c.b16 %v723, %v717
        %v892 = vpack.c.b16 %v724, %v718
        %v893 = vpack.c.b16 %v731, %v725
        %v894 = vpack.c.b16 %v732, %v726
        %v895 = vpack.c.b16 %v733, %v727
        %v896 = vpack.c.b16 %v734, %v728
        %v897 = vpack.c.b16 %v735, %v729
        %v898 = vpack.c.b16 %v736, %v730
        %v899 = vpack.c.b16 %v743, %v737
        %v900 = vpack.c.b16 %v744, %v738
        %v901 = vpack.c.b16 %v745, %v739
        %v902 = vpack.c.b16 %v746, %v740
        %v903 = vpack.c.b16 %v747, %v741
        %v904 = vpack.c.b16 %v748, %v742
        %v905 = vpack.c.b16 %v755, %v749
        %v906 = vpack.c.b16 %v756, %v750
        %v907 = vpack.c.b16 %v757, %v751
        %v908 = vpack.c.b16 %v758, %v752
        %v909 = vpack.c.b16 %v759, %v753
        %v910 = vpack.c.b16 %v760, %v754
        %v911 = vpack.c.b16 %v767, %v761
        %v912 = vpack.c.b16 %v768, %v762
        %v913 = vpack.c.b16 %v769, %v763
        %v914 = vpack.c.b16 %v770, %v764
        %v915 = vpack.c.b16 %v771, %v765
        %v916 = vpack.c.b16 %v772, %v766
        %v917 = vpack.c.b16 %v779, %v773
        %v918 = vpack.c.b16 %v780, %v774
        %v919 = vpack.c.b16 %v781, %v775
        %v920 = vpack.c.b16 %v782, %v776
        %v921 = vpack.c.b16 %v783, %v777
        %v922 = vpack.c.b16 %v784, %v778
        %v923 = vpack.c.b16 %v791, %v785
        %v924 = vpack.c.b16 %v792, %v786
        %v925 = vpack.c.b16 %v793, %v787
        %v926 = vpack.c.b16 %v794, %v788
        %v927 = vpack.c.b16 %v795, %v789
        %v928 = vpack.c.b16 %v796, %v790
        %v929 = vpack.c.b16 %v803, %v797
        %v930 = vpack.c.b16 %v804, %v798
        %v931 = vpack.c.b16 %v805, %v799
        %v932 = vpack.c.b16 %v806, %v800
        %v933 = vpack.c.b16 %v807, %v801
        %v934 = vpack.c.b16 %v808, %v802
        %v935 = vpack.c.b16 %v815, %v809
        %v936 = vpack.c.b16 %v816, %v810
        %v937 = vpack.c.b16 %v817, %v811
        %v938 = vpack.c.b16 %v818, %v812
        %v939 = vpack.c.b16 %v819, %v813
        %v940 = vpack.c.b16 %v820, %v814
        %v941 = vpack.c.b16 %v827, %v821
        %v942 = vpack.c.b16 %v828, %v822
        %v943 = vpack.c.b16 %v829, %v823
        %v944 = vpack.c.b16 %v830, %v824
        %v945 = vpack.c.b16 %v831, %v825
        %v946 = vpack.c.b16 %v832, %v826
        %v947 = vpack.c.b16 %v839, %v833
        %v948 = vpack.c.b16 %v840, %v834
        %v949 = vpack.c.b16 %v841, %v835
        %v950 = vpack.c.b16 %v842, %v836
        %v951 = vpack.c.b16 %v843, %v837
        %v952 = vpack.c.b16 %v844, %v838
        %v953 = vpack.c.b16 %v851, %v845
        %v954 = vpack.c.b16 %v852, %v846
        %v955 = vpack.c.b16 %v853, %v847
        %v956 = vpack.c.b16 %v854, %v848
        %v957 = vpack.c.b16 %v855, %v849
        %v958 = vpack.c.b16 %v856, %v850
        %v959 = vpack.c.b16 %v863, %v857
        %v960 = vpack.c.b16 %v864, %v858
        %v961 = vpack.c.b16 %v865, %v859
        %v962 = vpack.c.b16 %v866, %v860
        %v963 = vpack.c.b16 %v867, %v861
        %v964 = vpack.c.b16 %v868, %v862
        %1061 = vmatprep.subr.bf16.mxu0 %v912
        %1062 = vmatpush1.bf16.msra.mxu0 %v911
        %1063 = vmatprep.subr.bf16.mxu0 %v906
        %1064 = vmatpush1.bf16.msra.mxu0 %v905
        %1065 = vmatprep.subr.bf16.mxu0 %v900
        %1066 = vmatpush1.bf16.msra.mxu0 %v899
        %1067 = vmatprep.subr.bf16.mxu0 %v894
        %1068 = vmatpush1.bf16.msra.mxu0 %v893
        %1069 = vmatprep.subr.bf16.mxu0 %v888
        %1070 = vmatpush1.bf16.msra.mxu0 %v887
        %1071 = vmatprep.subr.bf16.mxu0 %v882
        %1072 = vmatpush1.bf16.msra.mxu0 %v881
        %1073 = vmatprep.subr.bf16.mxu0 %v876
        %1074 = vmatpush1.bf16.msra.mxu0 %v875
        %1075 = vmatprep.subr.bf16.mxu0 %v870
        %1076 = vmatpush1.bf16.msra.mxu0 %v869
        %1077 = vmatprep.subr.bf16.mxu0 %v960
        %1078 = vmatpush2.bf16.msra.mxu0 %v959
        %1079 = vmatprep.subr.bf16.mxu0 %v954
        %1080 = vmatpush2.bf16.msra.mxu0 %v953
        %1081 = vmatprep.subr.bf16.mxu0 %v948
        %1082 = vmatpush2.bf16.msra.mxu0 %v947
        %1083 = vmatprep.subr.bf16.mxu0 %v942
        %1084 = vmatpush2.bf16.msra.mxu0 %v941
        %1085 = vmatprep.subr.bf16.mxu0 %v936
        %1086 = vmatpush2.bf16.msra.mxu0 %v935
        %1087 = vmatprep.subr.bf16.mxu0 %v930
        %1088 = vmatpush2.bf16.msra.mxu0 %v929
        %1089 = vmatprep.subr.bf16.mxu0 %v924
        %1090 = vmatpush2.bf16.msra.mxu0 %v923
        %1091 = vmatprep.subr.bf16.mxu0 %v918
        %1092 = vmatpush2.bf16.msra.mxu0 %v917
        %1093 = vmatprep.mubr.bf16.mxu0 %v452
        %1094 = vmatmul.mubr.bf16.gmra.mxu0 %v451
        %v1095 = vpop.f32.mrf.mxu0
        %v1096 = vadd.f32 %v554, %v1095
        %v1097 = vpop.f32.mrf.mxu0
        %v1098 = vadd.f32 %v558, %v1097
        %v1099 = vpop.f32.mrf.mxu0
        %v1100 = vadd.f32 %v554, %v1099
        %v1101 = vpop.f32.mrf.mxu0
        %v1102 = vadd.f32 %v558, %v1101
        %1103 = vdwg.mxu0
        %1104 = vmatprep.subr.bf16.mxu0 %v914
        %1105 = vmatpush1.bf16.msra.mxu0 %v913
        %1106 = vmatprep.subr.bf16.mxu0 %v908
        %1107 = vmatpush1.bf16.msra.mxu0 %v907
        %1108 = vmatprep.subr.bf16.mxu0 %v902
        %1109 = vmatpush1.bf16.msra.mxu0 %v901
        %1110 = vmatprep.subr.bf16.mxu0 %v896
        %1111 = vmatpush1.bf16.msra.mxu0 %v895
        %1112 = vmatprep.subr.bf16.mxu0 %v890
        %1113 = vmatpush1.bf16.msra.mxu0 %v889
        %1114 = vmatprep.subr.bf16.mxu0 %v884
        %1115 = vmatpush1.bf16.msra.mxu0 %v883
        %1116 = vmatprep.subr.bf16.mxu0 %v878
        %1117 = vmatpush1.bf16.msra.mxu0 %v877
        %1118 = vmatprep.subr.bf16.mxu0 %v872
        %1119 = vmatpush1.bf16.msra.mxu0 %v871
        %1120 = vmatprep.subr.bf16.mxu0 %v962
        %1121 = vmatpush2.bf16.msra.mxu0 %v961
        %1122 = vmatprep.subr.bf16.mxu0 %v956
        %1123 = vmatpush2.bf16.msra.mxu0 %v955
        %1124 = vmatprep.subr.bf16.mxu0 %v950
        %1125 = vmatpush2.bf16.msra.mxu0 %v949
        %1126 = vmatprep.subr.bf16.mxu0 %v944
        %1127 = vmatpush2.bf16.msra.mxu0 %v943
        %1128 = vmatprep.subr.bf16.mxu0 %v938
        %1129 = vmatpush2.bf16.msra.mxu0 %v937
        %1130 = vmatprep.subr.bf16.mxu0 %v932
        %1131 = vmatpush2.bf16.msra.mxu0 %v931
        %1132 = vmatprep.subr.bf16.mxu0 %v926
        %1133 = vmatpush2.bf16.msra.mxu0 %v925
        %1134 = vmatprep.subr.bf16.mxu0 %v920
        %1135 = vmatpush2.bf16.msra.mxu0 %v919
        %1136 = vmatprep.mubr.bf16.mxu0 %v452
        %1137 = vmatmul.mubr.bf16.gmra.mxu0 %v451
        %v1138 = vpop.f32.mrf.mxu0
        %v1139 = vadd.f32 %v562, %v1138
        %v1140 = vpop.f32.mrf.mxu0
        %v1141 = vadd.f32 %v566, %v1140
        %v1142 = vpop.f32.mrf.mxu0
        %v1143 = vadd.f32 %v562, %v1142
        %v1144 = vpop.f32.mrf.mxu0
        %v1145 = vadd.f32 %v566, %v1144
        %1146 = vdwg.mxu0
        %1147 = vmatprep.subr.bf16.mxu0 %v916
        %1148 = vmatpush1.bf16.msra.mxu0 %v915
        %1149 = vmatprep.subr.bf16.mxu0 %v910
        %1150 = vmatpush1.bf16.msra.mxu0 %v909
        %1151 = vmatprep.subr.bf16.mxu0 %v904
        %1152 = vmatpush1.bf16.msra.mxu0 %v903
        %1153 = vmatprep.subr.bf16.mxu0 %v898
        %1154 = vmatpush1.bf16.msra.mxu0 %v897
        %1155 = vmatprep.subr.bf16.mxu0 %v892
        %1156 = vmatpush1.bf16.msra.mxu0 %v891
        %1157 = vmatprep.subr.bf16.mxu0 %v886
        %1158 = vmatpush1.bf16.msra.mxu0 %v885
        %1159 = vmatprep.subr.bf16.mxu0 %v880
        %1160 = vmatpush1.bf16.msra.mxu0 %v879
        %1161 = vmatprep.subr.bf16.mxu0 %v874
        %1162 = vmatpush1.bf16.msra.mxu0 %v873
        %1163 = vmatprep.subr.bf16.mxu0 %v964
        %1164 = vmatpush2.bf16.msra.mxu0 %v963
        %1165 = vmatprep.subr.bf16.mxu0 %v958
        %1166 = vmatpush2.bf16.msra.mxu0 %v957
        %1167 = vmatprep.subr.bf16.mxu0 %v952
        %1168 = vmatpush2.bf16.msra.mxu0 %v951
        %1169 = vmatprep.subr.bf16.mxu0 %v946
        %1170 = vmatpush2.bf16.msra.mxu0 %v945
        %1171 = vmatprep.subr.bf16.mxu0 %v940
        %1172 = vmatpush2.bf16.msra.mxu0 %v939
        %1173 = vmatprep.subr.bf16.mxu0 %v934
        %1174 = vmatpush2.bf16.msra.mxu0 %v933
        %1175 = vmatprep.subr.bf16.mxu0 %v928
        %1176 = vmatpush2.bf16.msra.mxu0 %v927
        %1177 = vmatprep.subr.bf16.mxu0 %v922
        %1178 = vmatpush2.bf16.msra.mxu0 %v921
        %1179 = vmatprep.mubr.bf16.mxu0 %v452
        %1180 = vmatmul.mubr.bf16.gmra.mxu0 %v451
        %v1181 = vpop.f32.mrf.mxu0
        %v1182 = vadd.f32 %v570, %v1181
        %v1183 = vpop.f32.mrf.mxu0
        %v1184 = vadd.f32 %v574, %v1183
        %v1185 = vpop.f32.mrf.mxu0
        %v1186 = vadd.f32 %v570, %v1185
        %v1187 = vpop.f32.mrf.mxu0
        %v1188 = vadd.f32 %v574, %v1187
        %1189 = vdwg.mxu0
        %v1190 = vpack.c.bf16 %v1100, %v1096
        %v1191 = vpack.c.bf16 %v1102, %v1098
        %v1194 = vunpack.c.l.b16 %v1190
        %v1195 = vunpack.c.l.b16 %v1191
        %v1196 = vunpack.c.h.b16 %v1190
        %v1197 = vunpack.c.h.b16 %v1191
        %v1198 = vpack.c.b16 %v1195, %v1194
        %v1199 = vpack.c.b16 %v1197, %v1196
        %1202 = vst [vmem:[%s363] sm:$0xff] %v1198
        %1203 = vst [vmem:[%s363 + $0x8] sm:$0xff] %v1199
        %v1204 = vpack.c.bf16 %v1143, %v1139
        %v1205 = vpack.c.bf16 %v1145, %v1141
        %v1208 = vunpack.c.l.b16 %v1204
        %v1209 = vunpack.c.l.b16 %v1205
        %v1210 = vunpack.c.h.b16 %v1204
        %v1211 = vunpack.c.h.b16 %v1205
        %v1212 = vpack.c.b16 %v1209, %v1208
        %v1213 = vpack.c.b16 %v1211, %v1210
        %1216 = vst [vmem:[%s370] sm:$0xff] %v1212
        %1217 = vst [vmem:[%s370 + $0x8] sm:$0xff] %v1213
        %v1218 = vpack.c.bf16 %v1186, %v1182
        %v1219 = vpack.c.bf16 %v1188, %v1184
        %v1222 = vunpack.c.l.b16 %v1218
        %v1223 = vunpack.c.l.b16 %v1219
        %v1224 = vunpack.c.h.b16 %v1218
        %v1225 = vunpack.c.h.b16 %v1219
        %v1226 = vpack.c.b16 %v1223, %v1222
        %v1227 = vpack.c.b16 %v1225, %v1224
        %1230 = vst [vmem:[%s377] sm:$0xff] %v1226
        %1231 = vst [vmem:[%s377 + $0x8] sm:$0xff] %v1227
        %s1232 = sand.u32 %s164, 1
        %s1233 = scalar_lea.sflag [#allocation4], %s1232
        %s1234 = sand.u32 %s164, 1
        %s1235 = smul.addr %s1234, 16
        %s1236 = scalar_lea.vmem [#allocation10], %s1235
        %s1237 = sand.u32 %s30, 1
        %s1238 = scalar_lea.sflag [#allocation12], %s1237
        %s1239 = sand.u32 %s192, 1
        %s1240 = smul.addr %s1239, 16
        %s1241 = scalar_lea.vmem [#allocation11], %s1240
        %s1242 = sand.u32 %s30, 1
        %s1243 = scalar_lea.sflag [#allocation12], %s1242
        %s1244 = sand.u32 %s220, 1
        %s1245 = smul.addr %s1244, 16
        %s1246 = scalar_lea.vmem [#allocation13], %s1245
        // Predicated region
        $region57: #{tpu_custom_call.1} parent=39 // pred_check
          %p1247 = pneg %p174
        $region58: #{tpu_custom_call.1} parent=39 // pred_check_branch
          %1249 = sbr.rel (%p1247) target = $region60
        $region59: #{tpu_custom_call.1} parent=39 // pred_region
          %s1250 = smul.u32 2, %s35
          %s1252 = ssub.s32 256, 256
          %1253 = vsyncadd %s1233, %s1252
          %s1254 = smul.addr %s1250, 2
          %s1255 = smul.addr %s34, 4
          %s1256 = sadd.s32 %s1254, %s1255
          %s1257 = smul.addr %s1256, 64
          %s1258 = scalar_lea.hbm %s5, %s1257
          %s1259 = sshll.u32 %s1236, 4
          %s1260 = int_to_ptr.vmem [resolvable:$true] %s1259
          %1265 = dma.vmem_to_hbm [thread:$0]  %s1260, 256, %s1258, %s1233, 128, 128, 8
        $region60: #{tpu_custom_call.1} parent=39 // pred_fallthru
          _
        // Predicated region
        $region61: #{tpu_custom_call.1} parent=39 // pred_check
          %p1266 = pneg %p202
        $region62: #{tpu_custom_call.1} parent=39 // pred_check_branch
          %1268 = sbr.rel (%p1266) target = $region64
        $region63: #{tpu_custom_call.1} parent=39 // pred_region
          %s1269 = smul.u32 2, %s35
          %s1271 = ssub.s32 256, 256
          %1272 = vsyncadd %s1238, %s1271
          %s1273 = smul.addr %s1269, 2
          %s1274 = smul.addr %s34, 4
          %s1275 = sadd.s32 %s1273, %s1274
          %s1276 = smul.addr %s1275, 64
          %s1277 = scalar_lea.hbm %s6, %s1276
          %s1278 = sshll.u32 %s1241, 4
          %s1279 = int_to_ptr.vmem [resolvable:$true] %s1278
          %1284 = dma.vmem_to_hbm [thread:$0]  %s1279, 256, %s1277, %s1238, 128, 128, 8
        $region64: #{tpu_custom_call.1} parent=39 // pred_fallthru
          _
        // Predicated region
        $region65: #{tpu_custom_call.1} parent=39 // pred_check
          %p1285 = pneg %p230
        $region66: #{tpu_custom_call.1} parent=39 // pred_check_branch
          %1287 = sbr.rel (%p1285) target = $region68
        $region67: #{tpu_custom_call.1} parent=39 // pred_region
          %s1288 = smul.u32 2, %s35
          %s1290 = ssub.s32 256, 256
          %1291 = vsyncadd %s1243, %s1290
          %s1292 = smul.addr %s1288, 2
          %s1293 = smul.addr %s34, 4
          %s1294 = sadd.s32 %s1292, %s1293
          %s1295 = smul.addr %s1294, 64
          %s1296 = scalar_lea.hbm %s7, %s1295
          %s1297 = sshll.u32 %s1246, 4
          %s1298 = int_to_ptr.vmem [resolvable:$true] %s1297
          %1303 = dma.vmem_to_hbm [thread:$0]  %s1298, 256, %s1296, %s1243, 128, 128, 8
        $region68: #{tpu_custom_call.1} parent=39 // pred_fallthru
          _
      $region40: #{tpu_custom_call.1} parent=5 // pred_fallthru
        _
      %p1304 = scmp.le.s32.totalorder 2, %s25
      // Predicated region
      $region69: #{tpu_custom_call.1} parent=5 // pred_check
        %p1305 = pneg %p1304
      $region70: #{tpu_custom_call.1} parent=5 // pred_check_branch
        %1307 = sbr.rel (%p1305) target = $region72
      $region71: #{tpu_custom_call.1} parent=5 // pred_region
        %s1308 = ssub.s32 %s25, 2
        // Predicated region
        $region73: #{tpu_custom_call.1} parent=71 // pred_check
          %p1309 = pneg %p180
        $region74: #{tpu_custom_call.1} parent=71 // pred_check_branch
          %1311 = sbr.rel (%p1309) target = $region76
        $region75: #{tpu_custom_call.1} parent=71 // pred_region
          %s1312 = sand.u32 %s165, 1
          %s1313 = scalar_lea.sflag [#allocation4], %s1312
          %s1314 = sand.u32 %s165, 1
          %s1315 = smul.addr %s1314, 16
          %s1316 = scalar_lea.vmem [#allocation10], %s1315
          %1317 = dma.done %s1313, 256
        $region76: #{tpu_custom_call.1} parent=71 // pred_fallthru
          _
        // Predicated region
        $region77: #{tpu_custom_call.1} parent=71 // pred_check
          %p1318 = pneg %p208
        $region78: #{tpu_custom_call.1} parent=71 // pred_check_branch
          %1320 = sbr.rel (%p1318) target = $region80
        $region79: #{tpu_custom_call.1} parent=71 // pred_region
          %s1321 = sand.u32 %s31, 1
          %s1322 = scalar_lea.sflag [#allocation12], %s1321
          %s1323 = sand.u32 %s193, 1
          %s1324 = smul.addr %s1323, 16
          %s1325 = scalar_lea.vmem [#allocation11], %s1324
          %1326 = dma.done %s1322, 256
        $region80: #{tpu_custom_call.1} parent=71 // pred_fallthru
          _
        // Predicated region
        $region81: #{tpu_custom_call.1} parent=71 // pred_check
          %p1327 = pneg %p236
        $region82: #{tpu_custom_call.1} parent=71 // pred_check_branch
          %1329 = sbr.rel (%p1327) target = $region84
        $region83: #{tpu_custom_call.1} parent=71 // pred_region
          %s1330 = sand.u32 %s31, 1
          %s1331 = scalar_lea.sflag [#allocation12], %s1330
          %s1332 = sand.u32 %s221, 1
          %s1333 = smul.addr %s1332, 16
          %s1334 = scalar_lea.vmem [#allocation13], %s1333
          %1335 = dma.done %s1331, 256
        $region84: #{tpu_custom_call.1} parent=71 // pred_fallthru
          _
      $region72: #{tpu_custom_call.1} parent=5 // pred_fallthru
        _
    $region6: #{tpu_custom_call.1} parent=1 // loop_footer
      %s29 = sadd.s32 1, %s25
    $region7: #{tpu_custom_call.1} parent=1 // loop_footer_branch
      %24 = sbr.rel target = $region3
    $region8: #{tpu_custom_call.1} parent=1 // loop_exit
      _
    %1336 = vsyncpa [#allocation3], 1
    %s1337 = scalar_lea.sflag [#allocation3], 1
    %1338 = vsyncpa %s1337, 1
    %1339 = vsyncpa [#allocation6], 1
    %1340 = vsyncpa [#allocation9], 1
    %1341 = vsyncpa [#allocation4], 1
    %s1342 = scalar_lea.sflag [#allocation4], 1
    %1343 = vsyncpa %s1342, 1
    %1344 = vsyncpa [#allocation12], 1
    %s1345 = scalar_lea.sflag [#allocation12], 1
    %1346 = vsyncpa %s1345, 1

</llo_original>
